<compile_context>
chip_gen: v5e
topology: v5e:2x2
jax: 0.10.0
libtpu: 0.0.40
codegen_flags: <defaults>
</compile_context>

<pallas_src>
import math
from functools import partial

import jax
import jax.numpy as jnp
from jax import lax
from jax.experimental import pallas as pl
from jax.experimental.pallas import tpu as pltpu

_NEG_BIG = -1e30  # finite "minus infinity" for the causal mask (NaN-safe)


# ----------------------------------------------------------------------------
# One-time parameter preparation (call once at init, NOT per forward)
# ----------------------------------------------------------------------------
def prepare_clip_layer_params(params, n_head):
    """Cast matmul weights to bf16 (MXU operands) and fold the 1/sqrt(d_head)
    attention scale into the Q third of the in-projection. Biases / LN params
    stay fp32 (applied after fp32 accumulation)."""
    (ln1_g, ln1_b, wqkv, bqkv, wo, bo, ln2_g, ln2_b, w1, b1, w2, b2) = params
    D = wqkv.shape[0]
    d_head = D // n_head
    scale = 1.0 / math.sqrt(d_head)
    col_scale = jnp.concatenate(
        [jnp.full((D,), scale, wqkv.dtype), jnp.ones((2 * D,), wqkv.dtype)])
    wqkv = wqkv * col_scale
    bqkv = bqkv * col_scale
    return (ln1_g, ln1_b,
            wqkv.astype(jnp.bfloat16), bqkv,
            wo.astype(jnp.bfloat16), bo,
            ln2_g, ln2_b,
            w1.astype(jnp.bfloat16), b1,
            w2.astype(jnp.bfloat16), b2)


# ----------------------------------------------------------------------------
# Kernel
# ----------------------------------------------------------------------------
def _clip_layer_kernel(n_head, d_head, heads_per_store,
                       x_ref,
                       ln1_g_ref, ln1_b_ref,
                       wqkv_ref, bqkv_ref,
                       wo_ref, bo_ref,
                       ln2_g_ref, ln2_b_ref,
                       w1_ref, b1_ref,
                       w2_ref, b2_ref,
                       o_ref,
                       attn_ref):
    Bt, S, D = x_ref.shape
    M = Bt * S
    eps = 1e-5

    # Fold batch into the M dim for the wide matmuls (MXU row fill).
    x = x_ref[...].reshape(M, D)                      # fp32

    def layer_norm(v, g, b):
        mu = jnp.mean(v, axis=-1, keepdims=True)
        c = v - mu
        var = jnp.mean(c * c, axis=-1, keepdims=True)  # two-pass (centered)
        return c * lax.rsqrt(var + eps) * g + b

    # ---------------- LayerNorm 1 + QKV projection ----------------
    h = layer_norm(x, ln1_g_ref[...], ln1_b_ref[...])
    qkv = jnp.dot(h.astype(jnp.bfloat16), wqkv_ref[...],
                  preferred_element_type=jnp.float32) + bqkv_ref[...]
    # 1/sqrt(d_head) is already folded into the Q columns of wqkv/bqkv.
    q16 = qkv[:, 0 * D:1 * D].astype(jnp.bfloat16)
    k16 = qkv[:, 1 * D:2 * D].astype(jnp.bfloat16)
    v16 = qkv[:, 2 * D:3 * D].astype(jnp.bfloat16)

    row = lax.broadcasted_iota(jnp.int32, (S, S), 0)
    col = lax.broadcasted_iota(jnp.int32, (S, S), 1)
    causal = col > row                                 # torch.triu(..., 1)

    # ---------------- causal self-attention, per (batch, head) ----------------
    # Per-head results are accumulated into lane-aligned groups (>=128 lanes,
    # or full D) and stored with a single unmasked store per group into the
    # bf16 attention slab.
    # TODO(synk): for n_head >= 12, convert this static head loop into a
    # lax.fori_loop over 128-lane head groups (with q/k/v staged in VMEM refs)
    # to bound live ranges; at the shapes exercised here it is not needed.
    group_w = heads_per_store * d_head
    for b in range(Bt):
        rows = slice(b * S, (b + 1) * S)
        q_b = q16[rows]
        k_t = k16[rows].T                              # one (S,D)->(D,S) per batch
        v_b = v16[rows]
        parts = []
        for hh in range(n_head):
            sl = slice(hh * d_head, (hh + 1) * d_head)
            s = jnp.dot(q_b[:, sl], k_t[sl, :],
                        preferred_element_type=jnp.float32)
            s = jnp.where(causal, _NEG_BIG, s)
            m = jnp.max(s, axis=-1, keepdims=True)
            e = jnp.exp(s - m)
            p = e * pl.reciprocal(jnp.sum(e, axis=-1, keepdims=True), approx=True)
            pv = jnp.dot(p.astype(jnp.bfloat16), v_b[:, sl],
                         preferred_element_type=jnp.float32)
            parts.append(pv.astype(jnp.bfloat16))
            if (hh + 1) % heads_per_store == 0:
                blk = parts[0] if heads_per_store == 1 else jnp.concatenate(parts, axis=-1)
                c0 = (hh + 1 - heads_per_store) * d_head
                attn_ref[b, :, c0:c0 + group_w] = blk
                parts = []

    attn = jnp.dot(attn_ref[...].reshape(M, D), wo_ref[...],
                   preferred_element_type=jnp.float32) + bo_ref[...]
    x = x + attn                                       # residual 1

    # ---------------- LayerNorm 2 + QuickGELU MLP ----------------
    h = layer_norm(x, ln2_g_ref[...], ln2_b_ref[...])
    h = jnp.dot(h.astype(jnp.bfloat16), w1_ref[...],
                preferred_element_type=jnp.float32) + b1_ref[...]
    h = h * jax.nn.sigmoid(1.702 * h)                  # QuickGELU, fp32 VPU/EUP
    h = jnp.dot(h.astype(jnp.bfloat16), w2_ref[...],
                preferred_element_type=jnp.float32) + b2_ref[...]
    o_ref[...] = (x + h).reshape(Bt, S, D).astype(o_ref.dtype)  # residual 2


# ----------------------------------------------------------------------------
# Wrapper
# ----------------------------------------------------------------------------
def _pick_batch_tile(B, S):
    """Largest divisor of B with Bt*S around one full MXU pass (~256 rows),
    while trying to keep >=2 parallel grid steps (v7x has 2 TensorCores)."""
    target = max(1, -(-256 // S))
    bt = 1
    for d in range(1, B + 1):
        if B % d == 0 and d <= target:
            bt = d
    while B // bt < 2 and bt > 1 and bt % 2 == 0 and (bt // 2) * S >= 256:
        bt //= 2
    return bt


def _heads_per_store(n_head, d_head, D):
    """Number of heads whose outputs are concatenated into one lane-aligned
    store (width a multiple of 128 lanes, or the full D)."""
    if D <= 128:
        return n_head
    divisors = [d for d in range(1, n_head + 1) if n_head % d == 0]
    for d in divisors:
        if (d * d_head) % 128 == 0:
            return d
    for d in divisors:
        if d * d_head >= 128:
            return d
    return n_head


def clip_layer(x, prepared_params, n_head):
    """x: (B, S, D) fp32.  prepared_params: output of prepare_clip_layer_params."""
    B, S, D = x.shape
    assert D % n_head == 0
    d_head = D // n_head
    (ln1_g, ln1_b, wqkv16, bqkv, wo16, bo,
     ln2_g, ln2_b, w116, b1, w216, b2) = prepared_params

    bt = _pick_batch_tile(B, S)
    hps = _heads_per_store(n_head, d_head, D)
    M = bt * S

    kernel = partial(_clip_layer_kernel, n_head, d_head, hps)

    def const_spec(shape):
        # Same block every grid step -> single buffer (double-buffering a
        # constant operand just doubles resident VMEM for no overlap benefit).
        n = len(shape)
        return pl.BlockSpec(shape, lambda b, _n=n: (0,) * _n,
                            pipeline_mode=pl.Buffered(1))

    in_specs = [
        pl.BlockSpec((bt, S, D), lambda b: (b, 0, 0)),   # x
        const_spec((1, D)), const_spec((1, D)),          # ln1 gamma/beta
        const_spec((D, 3 * D)), const_spec((1, 3 * D)),  # in_proj W (bf16), b
        const_spec((D, D)), const_spec((1, D)),          # out_proj W (bf16), b
        const_spec((1, D)), const_spec((1, D)),          # ln2 gamma/beta
        const_spec((D, 4 * D)), const_spec((1, 4 * D)),  # linear_1 W (bf16), b
        const_spec((4 * D, D)), const_spec((1, D)),      # linear_2 W (bf16), b
    ]

    # VMEM budget: single-buffered bf16 weights + fp32 vectors + double-buffered
    # x/out blocks + bf16 attention slab + in-kernel intermediates, clamped to
    # (physical VMEM - 8 MiB headroom) so v5e/v6e can exceed 64 MiB while v7x
    # keeps room for Mosaic internal scratch.
    # TODO(synk): for very large D on v7x (e.g. ViT-H D=1280) the resident bf16
    # MLP weights overflow 64 MiB; stream w1/w2 over a K-tile grid axis instead.
    w_bytes = 2 * (D * 3 * D + D * D + D * 4 * D + 4 * D * D)
    vec_bytes = 4 * 13 * D
    io_bytes = 4 * M * D * 2 * 2                          # fp32 x/out, 2-buffered
    slab_bytes = 2 * M * D                                # bf16 attention slab
    tmp_bytes = (4 + 2) * 3 * M * D + (4 + 2) * 4 * M * D + 4 * 4 * S * S + 4 * M * D
    need = w_bytes + vec_bytes + io_bytes + slab_bytes + tmp_bytes
    try:
        vmem_cap = pltpu.get_tpu_info().vmem_capacity_bytes
    except Exception:
        vmem_cap = 64 << 20
    ceiling = vmem_cap - (8 << 20)
    vmem_limit = min(max(int(1.4 * need) + (2 << 20), 16 << 20), ceiling)

    return pl.pallas_call(
        kernel,
        out_shape=jax.ShapeDtypeStruct((B, S, D), x.dtype),
        grid_spec=pltpu.PrefetchScalarGridSpec(
            num_scalar_prefetch=0,
            grid=(B // bt,),
            in_specs=in_specs,
            out_specs=pl.BlockSpec((bt, S, D), lambda b: (b, 0, 0)),
            scratch_shapes=[pltpu.VMEM((bt, S, D), jnp.bfloat16)],  # attn slab
        ),
        compiler_params=pltpu.CompilerParams(
            dimension_semantics=("parallel",),
            vmem_limit_bytes=int(vmem_limit),
        ),
    )(x, ln1_g, ln1_b, wqkv16, bqkv, wo16, bo,
      ln2_g, ln2_b, w116, b1, w216, b2)


# ----------------------------------------------------------------------------
# Pure-JAX fp32 reference (mirrors the PyTorch forward exactly)
# ----------------------------------------------------------------------------
def clip_layer_ref(x, params, n_head):
    (ln1_g, ln1_b, wqkv, bqkv, wo, bo, ln2_g, ln2_b, w1, b1, w2, b2) = params
    B, S, D = x.shape
    dh = D // n_head

    def ln(v, g, b):
        mu = jnp.mean(v, -1, keepdims=True)
        var = jnp.mean((v - mu) ** 2, -1, keepdims=True)
        return (v - mu) / jnp.sqrt(var + 1e-5) * g + b

    res = x
    h = ln(x, ln1_g[0], ln1_b[0])
    qkv = h @ wqkv + bqkv[0]
    q, k, v = jnp.split(qkv, 3, axis=-1)
    q = q.reshape(B, S, n_head, dh).transpose(0, 2, 1, 3)
    k = k.reshape(B, S, n_head, dh).transpose(0, 2, 1, 3)
    v = v.reshape(B, S, n_head, dh).transpose(0, 2, 1, 3)
    w = jnp.einsum("bhqd,bhkd->bhqk", q, k)
    mask = jnp.triu(jnp.ones((S, S), bool), 1)
    w = jnp.where(mask, -jnp.inf, w) / math.sqrt(dh)
    w = jax.nn.softmax(w, axis=-1)
    o = jnp.einsum("bhqk,bhkd->bhqd", w, v).transpose(0, 2, 1, 3).reshape(B, S, D)
    x = o @ wo + bo[0] + res

    res = x
    h = ln(x, ln2_g[0], ln2_b[0])
    h = h @ w1 + b1[0]
    h = h * jax.nn.sigmoid(1.702 * h)
    h = h @ w2 + b2[0]
    return h + res


# ----------------------------------------------------------------------------
# Main
# ----------------------------------------------------------------------------
if __name__ == "__main__":
    B, S, D, n_head = 2, 8, 32, 4

    key = jax.random.PRNGKey(0)
    ks = jax.random.split(key, 16)

    params = (
        jnp.ones((1, D), jnp.float32),                               # ln1 gamma
        jnp.zeros((1, D), jnp.float32),                              # ln1 beta
        0.02 * jax.random.normal(ks[0], (D, 3 * D), jnp.float32),    # in_proj W
        0.02 * jax.random.normal(ks[1], (1, 3 * D), jnp.float32),    # in_proj b
        0.02 * jax.random.normal(ks[2], (D, D), jnp.float32),        # out_proj W
        0.02 * jax.random.normal(ks[3], (1, D), jnp.float32),        # out_proj b
        jnp.ones((1, D), jnp.float32),                               # ln2 gamma
        jnp.zeros((1, D), jnp.float32),                              # ln2 beta
        0.02 * jax.random.normal(ks[4], (D, 4 * D), jnp.float32),    # linear_1 W
        0.02 * jax.random.normal(ks[5], (1, 4 * D), jnp.float32),    # linear_1 b
        0.02 * jax.random.normal(ks[6], (4 * D, D), jnp.float32),    # linear_2 W
        0.02 * jax.random.normal(ks[7], (1, D), jnp.float32),        # linear_2 b
    )

    x = jax.random.normal(ks[8], (B, S, D), jnp.float32)

    # One-time prep (bf16 weights, folded attention scale) -- outside the
    # per-call path, so repeated forwards don't re-cast weights in HBM.
    prepped = prepare_clip_layer_params(params, n_head)

    out = clip_layer(x, prepped, n_head)
    out = jax.block_until_ready(out)

    ref = clip_layer_ref(x, params, n_head)
    assert out.shape == (B, S, D)
    # Tolerance accounts for bf16 MXU operands (fp32 reference, fp32 accumulate).
    assert jnp.allclose(out, ref, rtol=2e-2, atol=2e-2), (
        f"max err {jnp.max(jnp.abs(out - ref))}"
    )
    print("KERNEL_OK")
</pallas_src>

<mosaic_0001>
module attributes {stable_mosaic.version = 11 : i64} {
  func.func @_clip_layer_kernel(%arg0: i32, %arg1: memref<2x8x32xf32, #tpu.memory_space<vmem>>, %arg2: memref<1x32xf32, #tpu.memory_space<vmem>>, %arg3: memref<1x32xf32, #tpu.memory_space<vmem>>, %arg4: memref<32x96xbf16, #tpu.memory_space<vmem>>, %arg5: memref<1x96xf32, #tpu.memory_space<vmem>>, %arg6: memref<32x32xbf16, #tpu.memory_space<vmem>>, %arg7: memref<1x32xf32, #tpu.memory_space<vmem>>, %arg8: memref<1x32xf32, #tpu.memory_space<vmem>>, %arg9: memref<1x32xf32, #tpu.memory_space<vmem>>, %arg10: memref<32x128xbf16, #tpu.memory_space<vmem>>, %arg11: memref<1x128xf32, #tpu.memory_space<vmem>>, %arg12: memref<128x32xbf16, #tpu.memory_space<vmem>>, %arg13: memref<1x32xf32, #tpu.memory_space<vmem>>, %arg14: memref<2x8x32xf32, #tpu.memory_space<vmem>>, %arg15: memref<2x8x32xbf16, #tpu.memory_space<vmem>>) attributes {dimension_semantics = [#tpu.dimension_semantics<parallel>], iteration_bounds = array<i64: 1>, scalar_prefetch = 0 : i64, scratch_operands = 1 : i64, tpu.core_type = #tpu.core_type<tc>, window_params = [{transform_indices = @transform_0, window_bounds = array<i64: 2, 8, 32>}, {pipeline_mode = #tpu.pipeline_mode<synchronous>, transform_indices = @transform_1, window_bounds = array<i64: 1, 32>}, {pipeline_mode = #tpu.pipeline_mode<synchronous>, transform_indices = @transform_2, window_bounds = array<i64: 1, 32>}, {pipeline_mode = #tpu.pipeline_mode<synchronous>, transform_indices = @transform_3, window_bounds = array<i64: 32, 96>}, {pipeline_mode = #tpu.pipeline_mode<synchronous>, transform_indices = @transform_4, window_bounds = array<i64: 1, 96>}, {pipeline_mode = #tpu.pipeline_mode<synchronous>, transform_indices = @transform_5, window_bounds = array<i64: 32, 32>}, {pipeline_mode = #tpu.pipeline_mode<synchronous>, transform_indices = @transform_6, window_bounds = array<i64: 1, 32>}, {pipeline_mode = #tpu.pipeline_mode<synchronous>, transform_indices = @transform_7, window_bounds = array<i64: 1, 32>}, {pipeline_mode = #tpu.pipeline_mode<synchronous>, transform_indices = @transform_8, window_bounds = array<i64: 1, 32>}, {pipeline_mode = #tpu.pipeline_mode<synchronous>, transform_indices = @transform_9, window_bounds = array<i64: 32, 128>}, {pipeline_mode = #tpu.pipeline_mode<synchronous>, transform_indices = @transform_10, window_bounds = array<i64: 1, 128>}, {pipeline_mode = #tpu.pipeline_mode<synchronous>, transform_indices = @transform_11, window_bounds = array<i64: 128, 32>}, {pipeline_mode = #tpu.pipeline_mode<synchronous>, transform_indices = @transform_12, window_bounds = array<i64: 1, 32>}, {transform_indices = @transform_13, window_bounds = array<i64: 2, 8, 32>}]} {
    %c0 = arith.constant 0 : index
    %c0_0 = arith.constant 0 : index
    %c0_1 = arith.constant 0 : index
    %0 = vector.load %arg1[%c0, %c0_0, %c0_1] : memref<2x8x32xf32, #tpu.memory_space<vmem>>, vector<2x8x32xf32>
    %1 = vector.shape_cast %0 : vector<2x8x32xf32> to vector<16x32xf32>
    %c0_2 = arith.constant 0 : index
    %c0_3 = arith.constant 0 : index
    %2 = vector.load %arg2[%c0_2, %c0_3] : memref<1x32xf32, #tpu.memory_space<vmem>>, vector<1x32xf32>
    %c0_4 = arith.constant 0 : index
    %c0_5 = arith.constant 0 : index
    %3 = vector.load %arg3[%c0_4, %c0_5] : memref<1x32xf32, #tpu.memory_space<vmem>>, vector<1x32xf32>
    %cst = arith.constant dense<0.000000e+00> : vector<16xf32>
    %4 = vector.multi_reduction <add>, %1, %cst [1] : vector<16x32xf32> to vector<16xf32>
    %5 = vector.shape_cast %4 : vector<16xf32> to vector<16x1xf32>
    %cst_6 = arith.constant 3.200000e+01 : f32
    %6 = vector.broadcast %cst_6 : f32 to vector<16x1xf32>
    %7 = arith.divf %5, %6 : vector<16x1xf32>
    %8 = vector.broadcast %7 : vector<16x1xf32> to vector<16x32xf32>
    %9 = arith.subf %1, %8 : vector<16x32xf32>
    %10 = arith.mulf %9, %9 : vector<16x32xf32>
    %cst_7 = arith.constant dense<0.000000e+00> : vector<16xf32>
    %11 = vector.multi_reduction <add>, %10, %cst_7 [1] : vector<16x32xf32> to vector<16xf32>
    %12 = vector.shape_cast %11 : vector<16xf32> to vector<16x1xf32>
    %cst_8 = arith.constant 3.200000e+01 : f32
    %13 = vector.broadcast %cst_8 : f32 to vector<16x1xf32>
    %14 = arith.divf %12, %13 : vector<16x1xf32>
    %cst_9 = arith.constant 9.99999974E-6 : f32
    %15 = vector.broadcast %cst_9 : f32 to vector<16x1xf32>
    %16 = arith.addf %14, %15 : vector<16x1xf32>
    %17 = math.rsqrt %16 : vector<16x1xf32>
    %18 = vector.broadcast %17 : vector<16x1xf32> to vector<16x32xf32>
    %19 = arith.mulf %9, %18 : vector<16x32xf32>
    %20 = vector.broadcast %2 : vector<1x32xf32> to vector<16x32xf32>
    %21 = arith.mulf %19, %20 : vector<16x32xf32>
    %22 = vector.broadcast %3 : vector<1x32xf32> to vector<16x32xf32>
    %23 = arith.addf %21, %22 : vector<16x32xf32>
    %24 = arith.truncf %23 : vector<16x32xf32> to vector<16x32xbf16>
    %c0_10 = arith.constant 0 : index
    %c0_11 = arith.constant 0 : index
    %25 = vector.load %arg4[%c0_10, %c0_11] : memref<32x96xbf16, #tpu.memory_space<vmem>>, vector<32x96xbf16>
    %cst_12 = arith.constant dense<0.000000e+00> : vector<16x96xf32>
    %26 = tpu.matmul %24, %25, %cst_12 {dimension_numbers = #tpu.dot_dimension_numbers<[1], [0], [0], [1], [0, 0, 1, 1], [], []>} : vector<16x32xbf16>, vector<32x96xbf16>, vector<16x96xf32> -> vector<16x96xf32>
    %c0_13 = arith.constant 0 : index
    %c0_14 = arith.constant 0 : index
    %27 = vector.load %arg5[%c0_13, %c0_14] : memref<1x96xf32, #tpu.memory_space<vmem>>, vector<1x96xf32>
    %28 = vector.broadcast %27 : vector<1x96xf32> to vector<16x96xf32>
    %29 = arith.addf %26, %28 : vector<16x96xf32>
    %30 = vector.extract_strided_slice %29 {offsets = [0, 0], sizes = [16, 32], strides = [1, 1]} : vector<16x96xf32> to vector<16x32xf32>
    %31 = arith.truncf %30 : vector<16x32xf32> to vector<16x32xbf16>
    %32 = vector.extract_strided_slice %29 {offsets = [0, 32], sizes = [16, 32], strides = [1, 1]} : vector<16x96xf32> to vector<16x32xf32>
    %33 = arith.truncf %32 : vector<16x32xf32> to vector<16x32xbf16>
    %34 = vector.extract_strided_slice %29 {offsets = [0, 64], sizes = [16, 32], strides = [1, 1]} : vector<16x96xf32> to vector<16x32xf32>
    %35 = arith.truncf %34 : vector<16x32xf32> to vector<16x32xbf16>
    %36 = tpu.iota {dimensions = array<i32: 0>} : vector<8x8xi32>
    %37 = tpu.iota {dimensions = array<i32: 1>} : vector<8x8xi32>
    %38 = arith.cmpi sgt, %37, %36 : vector<8x8xi32>
    %39 = vector.extract_strided_slice %31 {offsets = [0, 0], sizes = [8, 32], strides = [1, 1]} : vector<16x32xbf16> to vector<8x32xbf16>
    %40 = vector.extract_strided_slice %33 {offsets = [0, 0], sizes = [8, 32], strides = [1, 1]} : vector<16x32xbf16> to vector<8x32xbf16>
    %41 = tpu.transpose %40, [1, 0] : vector<8x32xbf16> -> vector<32x8xbf16>
    %42 = vector.extract_strided_slice %35 {offsets = [0, 0], sizes = [8, 32], strides = [1, 1]} : vector<16x32xbf16> to vector<8x32xbf16>
    %43 = vector.extract_strided_slice %39 {offsets = [0, 0], sizes = [8, 8], strides = [1, 1]} : vector<8x32xbf16> to vector<8x8xbf16>
    %44 = vector.extract_strided_slice %41 {offsets = [0, 0], sizes = [8, 8], strides = [1, 1]} : vector<32x8xbf16> to vector<8x8xbf16>
    %cst_15 = arith.constant dense<0.000000e+00> : vector<8x8xf32>
    %45 = tpu.matmul %43, %44, %cst_15 {dimension_numbers = #tpu.dot_dimension_numbers<[1], [0], [0], [1], [0, 0, 1, 1], [], []>} : vector<8x8xbf16>, vector<8x8xbf16>, vector<8x8xf32> -> vector<8x8xf32>
    %cst_16 = arith.constant -1.000000e+30 : f32
    %46 = vector.broadcast %cst_16 : f32 to vector<8x8xf32>
    %47 = arith.select %38, %46, %45 : vector<8x8xi1>, vector<8x8xf32>
    %cst_17 = arith.constant dense<0xFF800000> : vector<8xf32>
    %48 = vector.multi_reduction <maximumf>, %47, %cst_17 [1] : vector<8x8xf32> to vector<8xf32>
    %49 = vector.shape_cast %48 : vector<8xf32> to vector<8x1xf32>
    %50 = vector.broadcast %49 : vector<8x1xf32> to vector<8x8xf32>
    %51 = arith.subf %47, %50 : vector<8x8xf32>
    %52 = math.exp %51 : vector<8x8xf32>
    %cst_18 = arith.constant dense<0.000000e+00> : vector<8xf32>
    %53 = vector.multi_reduction <add>, %52, %cst_18 [1] : vector<8x8xf32> to vector<8xf32>
    %54 = vector.shape_cast %53 : vector<8xf32> to vector<8x1xf32>
    %55 = tpu.reciprocal %54 {approx = true} : vector<8x1xf32> -> vector<8x1xf32>
    %56 = vector.broadcast %55 : vector<8x1xf32> to vector<8x8xf32>
    %57 = arith.mulf %52, %56 : vector<8x8xf32>
    %58 = arith.truncf %57 : vector<8x8xf32> to vector<8x8xbf16>
    %59 = vector.extract_strided_slice %42 {offsets = [0, 0], sizes = [8, 8], strides = [1, 1]} : vector<8x32xbf16> to vector<8x8xbf16>
    %cst_19 = arith.constant dense<0.000000e+00> : vector<8x8xf32>
    %60 = tpu.matmul %58, %59, %cst_19 {dimension_numbers = #tpu.dot_dimension_numbers<[1], [0], [0], [1], [0, 0, 1, 1], [], []>} : vector<8x8xbf16>, vector<8x8xbf16>, vector<8x8xf32> -> vector<8x8xf32>
    %61 = arith.truncf %60 : vector<8x8xf32> to vector<8x8xbf16>
    %62 = vector.extract_strided_slice %39 {offsets = [0, 8], sizes = [8, 8], strides = [1, 1]} : vector<8x32xbf16> to vector<8x8xbf16>
    %63 = vector.extract_strided_slice %41 {offsets = [8, 0], sizes = [8, 8], strides = [1, 1]} : vector<32x8xbf16> to vector<8x8xbf16>
    %cst_20 = arith.constant dense<0.000000e+00> : vector<8x8xf32>
    %64 = tpu.matmul %62, %63, %cst_20 {dimension_numbers = #tpu.dot_dimension_numbers<[1], [0], [0], [1], [0, 0, 1, 1], [], []>} : vector<8x8xbf16>, vector<8x8xbf16>, vector<8x8xf32> -> vector<8x8xf32>
    %cst_21 = arith.constant -1.000000e+30 : f32
    %65 = vector.broadcast %cst_21 : f32 to vector<8x8xf32>
    %66 = arith.select %38, %65, %64 : vector<8x8xi1>, vector<8x8xf32>
    %cst_22 = arith.constant dense<0xFF800000> : vector<8xf32>
    %67 = vector.multi_reduction <maximumf>, %66, %cst_22 [1] : vector<8x8xf32> to vector<8xf32>
    %68 = vector.shape_cast %67 : vector<8xf32> to vector<8x1xf32>
    %69 = vector.broadcast %68 : vector<8x1xf32> to vector<8x8xf32>
    %70 = arith.subf %66, %69 : vector<8x8xf32>
    %71 = math.exp %70 : vector<8x8xf32>
    %cst_23 = arith.constant dense<0.000000e+00> : vector<8xf32>
    %72 = vector.multi_reduction <add>, %71, %cst_23 [1] : vector<8x8xf32> to vector<8xf32>
    %73 = vector.shape_cast %72 : vector<8xf32> to vector<8x1xf32>
    %74 = tpu.reciprocal %73 {approx = true} : vector<8x1xf32> -> vector<8x1xf32>
    %75 = vector.broadcast %74 : vector<8x1xf32> to vector<8x8xf32>
    %76 = arith.mulf %71, %75 : vector<8x8xf32>
    %77 = arith.truncf %76 : vector<8x8xf32> to vector<8x8xbf16>
    %78 = vector.extract_strided_slice %42 {offsets = [0, 8], sizes = [8, 8], strides = [1, 1]} : vector<8x32xbf16> to vector<8x8xbf16>
    %cst_24 = arith.constant dense<0.000000e+00> : vector<8x8xf32>
    %79 = tpu.matmul %77, %78, %cst_24 {dimension_numbers = #tpu.dot_dimension_numbers<[1], [0], [0], [1], [0, 0, 1, 1], [], []>} : vector<8x8xbf16>, vector<8x8xbf16>, vector<8x8xf32> -> vector<8x8xf32>
    %80 = arith.truncf %79 : vector<8x8xf32> to vector<8x8xbf16>
    %81 = vector.extract_strided_slice %39 {offsets = [0, 16], sizes = [8, 8], strides = [1, 1]} : vector<8x32xbf16> to vector<8x8xbf16>
    %82 = vector.extract_strided_slice %41 {offsets = [16, 0], sizes = [8, 8], strides = [1, 1]} : vector<32x8xbf16> to vector<8x8xbf16>
    %cst_25 = arith.constant dense<0.000000e+00> : vector<8x8xf32>
    %83 = tpu.matmul %81, %82, %cst_25 {dimension_numbers = #tpu.dot_dimension_numbers<[1], [0], [0], [1], [0, 0, 1, 1], [], []>} : vector<8x8xbf16>, vector<8x8xbf16>, vector<8x8xf32> -> vector<8x8xf32>
    %cst_26 = arith.constant -1.000000e+30 : f32
    %84 = vector.broadcast %cst_26 : f32 to vector<8x8xf32>
    %85 = arith.select %38, %84, %83 : vector<8x8xi1>, vector<8x8xf32>
    %cst_27 = arith.constant dense<0xFF800000> : vector<8xf32>
    %86 = vector.multi_reduction <maximumf>, %85, %cst_27 [1] : vector<8x8xf32> to vector<8xf32>
    %87 = vector.shape_cast %86 : vector<8xf32> to vector<8x1xf32>
    %88 = vector.broadcast %87 : vector<8x1xf32> to vector<8x8xf32>
    %89 = arith.subf %85, %88 : vector<8x8xf32>
    %90 = math.exp %89 : vector<8x8xf32>
    %cst_28 = arith.constant dense<0.000000e+00> : vector<8xf32>
    %91 = vector.multi_reduction <add>, %90, %cst_28 [1] : vector<8x8xf32> to vector<8xf32>
    %92 = vector.shape_cast %91 : vector<8xf32> to vector<8x1xf32>
    %93 = tpu.reciprocal %92 {approx = true} : vector<8x1xf32> -> vector<8x1xf32>
    %94 = vector.broadcast %93 : vector<8x1xf32> to vector<8x8xf32>
    %95 = arith.mulf %90, %94 : vector<8x8xf32>
    %96 = arith.truncf %95 : vector<8x8xf32> to vector<8x8xbf16>
    %97 = vector.extract_strided_slice %42 {offsets = [0, 16], sizes = [8, 8], strides = [1, 1]} : vector<8x32xbf16> to vector<8x8xbf16>
    %cst_29 = arith.constant dense<0.000000e+00> : vector<8x8xf32>
    %98 = tpu.matmul %96, %97, %cst_29 {dimension_numbers = #tpu.dot_dimension_numbers<[1], [0], [0], [1], [0, 0, 1, 1], [], []>} : vector<8x8xbf16>, vector<8x8xbf16>, vector<8x8xf32> -> vector<8x8xf32>
    %99 = arith.truncf %98 : vector<8x8xf32> to vector<8x8xbf16>
    %100 = vector.extract_strided_slice %39 {offsets = [0, 24], sizes = [8, 8], strides = [1, 1]} : vector<8x32xbf16> to vector<8x8xbf16>
    %101 = vector.extract_strided_slice %41 {offsets = [24, 0], sizes = [8, 8], strides = [1, 1]} : vector<32x8xbf16> to vector<8x8xbf16>
    %cst_30 = arith.constant dense<0.000000e+00> : vector<8x8xf32>
    %102 = tpu.matmul %100, %101, %cst_30 {dimension_numbers = #tpu.dot_dimension_numbers<[1], [0], [0], [1], [0, 0, 1, 1], [], []>} : vector<8x8xbf16>, vector<8x8xbf16>, vector<8x8xf32> -> vector<8x8xf32>
    %cst_31 = arith.constant -1.000000e+30 : f32
    %103 = vector.broadcast %cst_31 : f32 to vector<8x8xf32>
    %104 = arith.select %38, %103, %102 : vector<8x8xi1>, vector<8x8xf32>
    %cst_32 = arith.constant dense<0xFF800000> : vector<8xf32>
    %105 = vector.multi_reduction <maximumf>, %104, %cst_32 [1] : vector<8x8xf32> to vector<8xf32>
    %106 = vector.shape_cast %105 : vector<8xf32> to vector<8x1xf32>
    %107 = vector.broadcast %106 : vector<8x1xf32> to vector<8x8xf32>
    %108 = arith.subf %104, %107 : vector<8x8xf32>
    %109 = math.exp %108 : vector<8x8xf32>
    %cst_33 = arith.constant dense<0.000000e+00> : vector<8xf32>
    %110 = vector.multi_reduction <add>, %109, %cst_33 [1] : vector<8x8xf32> to vector<8xf32>
    %111 = vector.shape_cast %110 : vector<8xf32> to vector<8x1xf32>
    %112 = tpu.reciprocal %111 {approx = true} : vector<8x1xf32> -> vector<8x1xf32>
    %113 = vector.broadcast %112 : vector<8x1xf32> to vector<8x8xf32>
    %114 = arith.mulf %109, %113 : vector<8x8xf32>
    %115 = arith.truncf %114 : vector<8x8xf32> to vector<8x8xbf16>
    %116 = vector.extract_strided_slice %42 {offsets = [0, 24], sizes = [8, 8], strides = [1, 1]} : vector<8x32xbf16> to vector<8x8xbf16>
    %cst_34 = arith.constant dense<0.000000e+00> : vector<8x8xf32>
    %117 = tpu.matmul %115, %116, %cst_34 {dimension_numbers = #tpu.dot_dimension_numbers<[1], [0], [0], [1], [0, 0, 1, 1], [], []>} : vector<8x8xbf16>, vector<8x8xbf16>, vector<8x8xf32> -> vector<8x8xf32>
    %118 = arith.truncf %117 : vector<8x8xf32> to vector<8x8xbf16>
    %119 = tpu.concatenate %61, %80, %99, %118 in 1 : vector<8x8xbf16>, vector<8x8xbf16>, vector<8x8xbf16>, vector<8x8xbf16> -> vector<8x32xbf16>
    %c0_35 = arith.constant 0 : index
    %c0_36 = arith.constant 0 : index
    %c0_37 = arith.constant 0 : index
    %120 = vector.load %arg15[%c0_35, %c0_36, %c0_37] : memref<2x8x32xbf16, #tpu.memory_space<vmem>>, vector<1x8x32xbf16>
    %121 = vector.shape_cast %120 : vector<1x8x32xbf16> to vector<8x32xbf16>
    %122 = vector.shape_cast %119 : vector<8x32xbf16> to vector<1x8x32xbf16>
    tpu.vector_store %arg15[%c0_35, %c0_36, %c0_37], %122 {strides = array<i32>} : memref<2x8x32xbf16, #tpu.memory_space<vmem>>, vector<1x8x32xbf16>,
    %123 = vector.extract_strided_slice %31 {offsets = [8, 0], sizes = [8, 32], strides = [1, 1]} : vector<16x32xbf16> to vector<8x32xbf16>
    %124 = vector.extract_strided_slice %33 {offsets = [8, 0], sizes = [8, 32], strides = [1, 1]} : vector<16x32xbf16> to vector<8x32xbf16>
    %125 = tpu.transpose %124, [1, 0] : vector<8x32xbf16> -> vector<32x8xbf16>
    %126 = vector.extract_strided_slice %35 {offsets = [8, 0], sizes = [8, 32], strides = [1, 1]} : vector<16x32xbf16> to vector<8x32xbf16>
    %127 = vector.extract_strided_slice %123 {offsets = [0, 0], sizes = [8, 8], strides = [1, 1]} : vector<8x32xbf16> to vector<8x8xbf16>
    %128 = vector.extract_strided_slice %125 {offsets = [0, 0], sizes = [8, 8], strides = [1, 1]} : vector<32x8xbf16> to vector<8x8xbf16>
    %cst_38 = arith.constant dense<0.000000e+00> : vector<8x8xf32>
    %129 = tpu.matmul %127, %128, %cst_38 {dimension_numbers = #tpu.dot_dimension_numbers<[1], [0], [0], [1], [0, 0, 1, 1], [], []>} : vector<8x8xbf16>, vector<8x8xbf16>, vector<8x8xf32> -> vector<8x8xf32>
    %cst_39 = arith.constant -1.000000e+30 : f32
    %130 = vector.broadcast %cst_39 : f32 to vector<8x8xf32>
    %131 = arith.select %38, %130, %129 : vector<8x8xi1>, vector<8x8xf32>
    %cst_40 = arith.constant dense<0xFF800000> : vector<8xf32>
    %132 = vector.multi_reduction <maximumf>, %131, %cst_40 [1] : vector<8x8xf32> to vector<8xf32>
    %133 = vector.shape_cast %132 : vector<8xf32> to vector<8x1xf32>
    %134 = vector.broadcast %133 : vector<8x1xf32> to vector<8x8xf32>
    %135 = arith.subf %131, %134 : vector<8x8xf32>
    %136 = math.exp %135 : vector<8x8xf32>
    %cst_41 = arith.constant dense<0.000000e+00> : vector<8xf32>
    %137 = vector.multi_reduction <add>, %136, %cst_41 [1] : vector<8x8xf32> to vector<8xf32>
    %138 = vector.shape_cast %137 : vector<8xf32> to vector<8x1xf32>
    %139 = tpu.reciprocal %138 {approx = true} : vector<8x1xf32> -> vector<8x1xf32>
    %140 = vector.broadcast %139 : vector<8x1xf32> to vector<8x8xf32>
    %141 = arith.mulf %136, %140 : vector<8x8xf32>
    %142 = arith.truncf %141 : vector<8x8xf32> to vector<8x8xbf16>
    %143 = vector.extract_strided_slice %126 {offsets = [0, 0], sizes = [8, 8], strides = [1, 1]} : vector<8x32xbf16> to vector<8x8xbf16>
    %cst_42 = arith.constant dense<0.000000e+00> : vector<8x8xf32>
    %144 = tpu.matmul %142, %143, %cst_42 {dimension_numbers = #tpu.dot_dimension_numbers<[1], [0], [0], [1], [0, 0, 1, 1], [], []>} : vector<8x8xbf16>, vector<8x8xbf16>, vector<8x8xf32> -> vector<8x8xf32>
    %145 = arith.truncf %144 : vector<8x8xf32> to vector<8x8xbf16>
    %146 = vector.extract_strided_slice %123 {offsets = [0, 8], sizes = [8, 8], strides = [1, 1]} : vector<8x32xbf16> to vector<8x8xbf16>
    %147 = vector.extract_strided_slice %125 {offsets = [8, 0], sizes = [8, 8], strides = [1, 1]} : vector<32x8xbf16> to vector<8x8xbf16>
    %cst_43 = arith.constant dense<0.000000e+00> : vector<8x8xf32>
    %148 = tpu.matmul %146, %147, %cst_43 {dimension_numbers = #tpu.dot_dimension_numbers<[1], [0], [0], [1], [0, 0, 1, 1], [], []>} : vector<8x8xbf16>, vector<8x8xbf16>, vector<8x8xf32> -> vector<8x8xf32>
    %cst_44 = arith.constant -1.000000e+30 : f32
    %149 = vector.broadcast %cst_44 : f32 to vector<8x8xf32>
    %150 = arith.select %38, %149, %148 : vector<8x8xi1>, vector<8x8xf32>
    %cst_45 = arith.constant dense<0xFF800000> : vector<8xf32>
    %151 = vector.multi_reduction <maximumf>, %150, %cst_45 [1] : vector<8x8xf32> to vector<8xf32>
    %152 = vector.shape_cast %151 : vector<8xf32> to vector<8x1xf32>
    %153 = vector.broadcast %152 : vector<8x1xf32> to vector<8x8xf32>
    %154 = arith.subf %150, %153 : vector<8x8xf32>
    %155 = math.exp %154 : vector<8x8xf32>
    %cst_46 = arith.constant dense<0.000000e+00> : vector<8xf32>
    %156 = vector.multi_reduction <add>, %155, %cst_46 [1] : vector<8x8xf32> to vector<8xf32>
    %157 = vector.shape_cast %156 : vector<8xf32> to vector<8x1xf32>
    %158 = tpu.reciprocal %157 {approx = true} : vector<8x1xf32> -> vector<8x1xf32>
    %159 = vector.broadcast %158 : vector<8x1xf32> to vector<8x8xf32>
    %160 = arith.mulf %155, %159 : vector<8x8xf32>
    %161 = arith.truncf %160 : vector<8x8xf32> to vector<8x8xbf16>
    %162 = vector.extract_strided_slice %126 {offsets = [0, 8], sizes = [8, 8], strides = [1, 1]} : vector<8x32xbf16> to vector<8x8xbf16>
    %cst_47 = arith.constant dense<0.000000e+00> : vector<8x8xf32>
    %163 = tpu.matmul %161, %162, %cst_47 {dimension_numbers = #tpu.dot_dimension_numbers<[1], [0], [0], [1], [0, 0, 1, 1], [], []>} : vector<8x8xbf16>, vector<8x8xbf16>, vector<8x8xf32> -> vector<8x8xf32>
    %164 = arith.truncf %163 : vector<8x8xf32> to vector<8x8xbf16>
    %165 = vector.extract_strided_slice %123 {offsets = [0, 16], sizes = [8, 8], strides = [1, 1]} : vector<8x32xbf16> to vector<8x8xbf16>
    %166 = vector.extract_strided_slice %125 {offsets = [16, 0], sizes = [8, 8], strides = [1, 1]} : vector<32x8xbf16> to vector<8x8xbf16>
    %cst_48 = arith.constant dense<0.000000e+00> : vector<8x8xf32>
    %167 = tpu.matmul %165, %166, %cst_48 {dimension_numbers = #tpu.dot_dimension_numbers<[1], [0], [0], [1], [0, 0, 1, 1], [], []>} : vector<8x8xbf16>, vector<8x8xbf16>, vector<8x8xf32> -> vector<8x8xf32>
    %cst_49 = arith.constant -1.000000e+30 : f32
    %168 = vector.broadcast %cst_49 : f32 to vector<8x8xf32>
    %169 = arith.select %38, %168, %167 : vector<8x8xi1>, vector<8x8xf32>
    %cst_50 = arith.constant dense<0xFF800000> : vector<8xf32>
    %170 = vector.multi_reduction <maximumf>, %169, %cst_50 [1] : vector<8x8xf32> to vector<8xf32>
    %171 = vector.shape_cast %170 : vector<8xf32> to vector<8x1xf32>
    %172 = vector.broadcast %171 : vector<8x1xf32> to vector<8x8xf32>
    %173 = arith.subf %169, %172 : vector<8x8xf32>
    %174 = math.exp %173 : vector<8x8xf32>
    %cst_51 = arith.constant dense<0.000000e+00> : vector<8xf32>
    %175 = vector.multi_reduction <add>, %174, %cst_51 [1] : vector<8x8xf32> to vector<8xf32>
    %176 = vector.shape_cast %175 : vector<8xf32> to vector<8x1xf32>
    %177 = tpu.reciprocal %176 {approx = true} : vector<8x1xf32> -> vector<8x1xf32>
    %178 = vector.broadcast %177 : vector<8x1xf32> to vector<8x8xf32>
    %179 = arith.mulf %174, %178 : vector<8x8xf32>
    %180 = arith.truncf %179 : vector<8x8xf32> to vector<8x8xbf16>
    %181 = vector.extract_strided_slice %126 {offsets = [0, 16], sizes = [8, 8], strides = [1, 1]} : vector<8x32xbf16> to vector<8x8xbf16>
    %cst_52 = arith.constant dense<0.000000e+00> : vector<8x8xf32>
    %182 = tpu.matmul %180, %181, %cst_52 {dimension_numbers = #tpu.dot_dimension_numbers<[1], [0], [0], [1], [0, 0, 1, 1], [], []>} : vector<8x8xbf16>, vector<8x8xbf16>, vector<8x8xf32> -> vector<8x8xf32>
    %183 = arith.truncf %182 : vector<8x8xf32> to vector<8x8xbf16>
    %184 = vector.extract_strided_slice %123 {offsets = [0, 24], sizes = [8, 8], strides = [1, 1]} : vector<8x32xbf16> to vector<8x8xbf16>
    %185 = vector.extract_strided_slice %125 {offsets = [24, 0], sizes = [8, 8], strides = [1, 1]} : vector<32x8xbf16> to vector<8x8xbf16>
    %cst_53 = arith.constant dense<0.000000e+00> : vector<8x8xf32>
    %186 = tpu.matmul %184, %185, %cst_53 {dimension_numbers = #tpu.dot_dimension_numbers<[1], [0], [0], [1], [0, 0, 1, 1], [], []>} : vector<8x8xbf16>, vector<8x8xbf16>, vector<8x8xf32> -> vector<8x8xf32>
    %cst_54 = arith.constant -1.000000e+30 : f32
    %187 = vector.broadcast %cst_54 : f32 to vector<8x8xf32>
    %188 = arith.select %38, %187, %186 : vector<8x8xi1>, vector<8x8xf32>
    %cst_55 = arith.constant dense<0xFF800000> : vector<8xf32>
    %189 = vector.multi_reduction <maximumf>, %188, %cst_55 [1] : vector<8x8xf32> to vector<8xf32>
    %190 = vector.shape_cast %189 : vector<8xf32> to vector<8x1xf32>
    %191 = vector.broadcast %190 : vector<8x1xf32> to vector<8x8xf32>
    %192 = arith.subf %188, %191 : vector<8x8xf32>
    %193 = math.exp %192 : vector<8x8xf32>
    %cst_56 = arith.constant dense<0.000000e+00> : vector<8xf32>
    %194 = vector.multi_reduction <add>, %193, %cst_56 [1] : vector<8x8xf32> to vector<8xf32>
    %195 = vector.shape_cast %194 : vector<8xf32> to vector<8x1xf32>
    %196 = tpu.reciprocal %195 {approx = true} : vector<8x1xf32> -> vector<8x1xf32>
    %197 = vector.broadcast %196 : vector<8x1xf32> to vector<8x8xf32>
    %198 = arith.mulf %193, %197 : vector<8x8xf32>
    %199 = arith.truncf %198 : vector<8x8xf32> to vector<8x8xbf16>
    %200 = vector.extract_strided_slice %126 {offsets = [0, 24], sizes = [8, 8], strides = [1, 1]} : vector<8x32xbf16> to vector<8x8xbf16>
    %cst_57 = arith.constant dense<0.000000e+00> : vector<8x8xf32>
    %201 = tpu.matmul %199, %200, %cst_57 {dimension_numbers = #tpu.dot_dimension_numbers<[1], [0], [0], [1], [0, 0, 1, 1], [], []>} : vector<8x8xbf16>, vector<8x8xbf16>, vector<8x8xf32> -> vector<8x8xf32>
    %202 = arith.truncf %201 : vector<8x8xf32> to vector<8x8xbf16>
    %203 = tpu.concatenate %145, %164, %183, %202 in 1 : vector<8x8xbf16>, vector<8x8xbf16>, vector<8x8xbf16>, vector<8x8xbf16> -> vector<8x32xbf16>
    %c1 = arith.constant 1 : index
    %c0_58 = arith.constant 0 : index
    %c0_59 = arith.constant 0 : index
    %204 = vector.load %arg15[%c1, %c0_58, %c0_59] : memref<2x8x32xbf16, #tpu.memory_space<vmem>>, vector<1x8x32xbf16>
    %205 = vector.shape_cast %204 : vector<1x8x32xbf16> to vector<8x32xbf16>
    %206 = vector.shape_cast %203 : vector<8x32xbf16> to vector<1x8x32xbf16>
    tpu.vector_store %arg15[%c1, %c0_58, %c0_59], %206 {strides = array<i32>} : memref<2x8x32xbf16, #tpu.memory_space<vmem>>, vector<1x8x32xbf16>,
    %c0_60 = arith.constant 0 : index
    %c0_61 = arith.constant 0 : index
    %c0_62 = arith.constant 0 : index
    %207 = vector.load %arg15[%c0_60, %c0_61, %c0_62] : memref<2x8x32xbf16, #tpu.memory_space<vmem>>, vector<2x8x32xbf16>
    %208 = vector.shape_cast %207 : vector<2x8x32xbf16> to vector<16x32xbf16>
    %c0_63 = arith.constant 0 : index
    %c0_64 = arith.constant 0 : index
    %209 = vector.load %arg6[%c0_63, %c0_64] : memref<32x32xbf16, #tpu.memory_space<vmem>>, vector<32x32xbf16>
    %cst_65 = arith.constant dense<0.000000e+00> : vector<16x32xf32>
    %210 = tpu.matmul %208, %209, %cst_65 {dimension_numbers = #tpu.dot_dimension_numbers<[1], [0], [0], [1], [0, 0, 1, 1], [], []>} : vector<16x32xbf16>, vector<32x32xbf16>, vector<16x32xf32> -> vector<16x32xf32>
    %c0_66 = arith.constant 0 : index
    %c0_67 = arith.constant 0 : index
    %211 = vector.load %arg7[%c0_66, %c0_67] : memref<1x32xf32, #tpu.memory_space<vmem>>, vector<1x32xf32>
    %212 = vector.broadcast %211 : vector<1x32xf32> to vector<16x32xf32>
    %213 = arith.addf %210, %212 : vector<16x32xf32>
    %214 = arith.addf %1, %213 : vector<16x32xf32>
    %c0_68 = arith.constant 0 : index
    %c0_69 = arith.constant 0 : index
    %215 = vector.load %arg8[%c0_68, %c0_69] : memref<1x32xf32, #tpu.memory_space<vmem>>, vector<1x32xf32>
    %c0_70 = arith.constant 0 : index
    %c0_71 = arith.constant 0 : index
    %216 = vector.load %arg9[%c0_70, %c0_71] : memref<1x32xf32, #tpu.memory_space<vmem>>, vector<1x32xf32>
    %cst_72 = arith.constant dense<0.000000e+00> : vector<16xf32>
    %217 = vector.multi_reduction <add>, %214, %cst_72 [1] : vector<16x32xf32> to vector<16xf32>
    %218 = vector.shape_cast %217 : vector<16xf32> to vector<16x1xf32>
    %cst_73 = arith.constant 3.200000e+01 : f32
    %219 = vector.broadcast %cst_73 : f32 to vector<16x1xf32>
    %220 = arith.divf %218, %219 : vector<16x1xf32>
    %221 = vector.broadcast %220 : vector<16x1xf32> to vector<16x32xf32>
    %222 = arith.subf %214, %221 : vector<16x32xf32>
    %223 = arith.mulf %222, %222 : vector<16x32xf32>
    %cst_74 = arith.constant dense<0.000000e+00> : vector<16xf32>
    %224 = vector.multi_reduction <add>, %223, %cst_74 [1] : vector<16x32xf32> to vector<16xf32>
    %225 = vector.shape_cast %224 : vector<16xf32> to vector<16x1xf32>
    %cst_75 = arith.constant 3.200000e+01 : f32
    %226 = vector.broadcast %cst_75 : f32 to vector<16x1xf32>
    %227 = arith.divf %225, %226 : vector<16x1xf32>
    %cst_76 = arith.constant 9.99999974E-6 : f32
    %228 = vector.broadcast %cst_76 : f32 to vector<16x1xf32>
    %229 = arith.addf %227, %228 : vector<16x1xf32>
    %230 = math.rsqrt %229 : vector<16x1xf32>
    %231 = vector.broadcast %230 : vector<16x1xf32> to vector<16x32xf32>
    %232 = arith.mulf %222, %231 : vector<16x32xf32>
    %233 = vector.broadcast %215 : vector<1x32xf32> to vector<16x32xf32>
    %234 = arith.mulf %232, %233 : vector<16x32xf32>
    %235 = vector.broadcast %216 : vector<1x32xf32> to vector<16x32xf32>
    %236 = arith.addf %234, %235 : vector<16x32xf32>
    %237 = arith.truncf %236 : vector<16x32xf32> to vector<16x32xbf16>
    %c0_77 = arith.constant 0 : index
    %c0_78 = arith.constant 0 : index
    %238 = vector.load %arg10[%c0_77, %c0_78] : memref<32x128xbf16, #tpu.memory_space<vmem>>, vector<32x128xbf16>
    %cst_79 = arith.constant dense<0.000000e+00> : vector<16x128xf32>
    %239 = tpu.matmul %237, %238, %cst_79 {dimension_numbers = #tpu.dot_dimension_numbers<[1], [0], [0], [1], [0, 0, 1, 1], [], []>} : vector<16x32xbf16>, vector<32x128xbf16>, vector<16x128xf32> -> vector<16x128xf32>
    %c0_80 = arith.constant 0 : index
    %c0_81 = arith.constant 0 : index
    %240 = vector.load %arg11[%c0_80, %c0_81] : memref<1x128xf32, #tpu.memory_space<vmem>>, vector<1x128xf32>
    %241 = vector.broadcast %240 : vector<1x128xf32> to vector<16x128xf32>
    %242 = arith.addf %239, %241 : vector<16x128xf32>
    %cst_82 = arith.constant 1.702000e+00 : f32
    %243 = vector.broadcast %cst_82 : f32 to vector<16x128xf32>
    %244 = arith.mulf %243, %242 : vector<16x128xf32>
    %245 = arith.negf %244 : vector<16x128xf32>
    %246 = math.exp %245 : vector<16x128xf32>
    %cst_83 = arith.constant 1.000000e+00 : f32
    %247 = vector.broadcast %cst_83 : f32 to vector<16x128xf32>
    %248 = arith.addf %247, %246 : vector<16x128xf32>
    %249 = arith.divf %247, %248 : vector<16x128xf32>
    %250 = arith.mulf %242, %249 : vector<16x128xf32>
    %251 = arith.truncf %250 : vector<16x128xf32> to vector<16x128xbf16>
    %c0_84 = arith.constant 0 : index
    %c0_85 = arith.constant 0 : index
    %252 = vector.load %arg12[%c0_84, %c0_85] : memref<128x32xbf16, #tpu.memory_space<vmem>>, vector<128x32xbf16>
    %cst_86 = arith.constant dense<0.000000e+00> : vector<16x32xf32>
    %253 = tpu.matmul %251, %252, %cst_86 {dimension_numbers = #tpu.dot_dimension_numbers<[1], [0], [0], [1], [0, 0, 1, 1], [], []>} : vector<16x128xbf16>, vector<128x32xbf16>, vector<16x32xf32> -> vector<16x32xf32>
    %c0_87 = arith.constant 0 : index
    %c0_88 = arith.constant 0 : index
    %254 = vector.load %arg13[%c0_87, %c0_88] : memref<1x32xf32, #tpu.memory_space<vmem>>, vector<1x32xf32>
    %255 = vector.broadcast %254 : vector<1x32xf32> to vector<16x32xf32>
    %256 = arith.addf %253, %255 : vector<16x32xf32>
    %257 = arith.addf %214, %256 : vector<16x32xf32>
    %258 = vector.shape_cast %257 : vector<16x32xf32> to vector<2x8x32xf32>
    %c0_89 = arith.constant 0 : index
    %c0_90 = arith.constant 0 : index
    %c0_91 = arith.constant 0 : index
    %259 = vector.load %arg14[%c0_89, %c0_90, %c0_91] : memref<2x8x32xf32, #tpu.memory_space<vmem>>, vector<2x8x32xf32>
    tpu.vector_store %arg14[%c0_89, %c0_90, %c0_91], %258 {strides = array<i32>} : memref<2x8x32xf32, #tpu.memory_space<vmem>>, vector<2x8x32xf32>,
    return
  }
  func.func @transform_0(%arg0: i32) -> (i32, i32, i32) {
    %c0_i32 = arith.constant 0 : i32
    %c0_i32_0 = arith.constant 0 : i32
    %c0_i32_1 = arith.constant 0 : i32
    return %arg0, %c0_i32, %c0_i32_0 : i32, i32, i32
  }
  func.func @transform_1(%arg0: i32) -> (i32, i32) {
    %c0_i32 = arith.constant 0 : i32
    %c0_i32_0 = arith.constant 0 : i32
    %c0_i32_1 = arith.constant 0 : i32
    return %c0_i32, %c0_i32_0 : i32, i32
  }
  func.func @transform_2(%arg0: i32) -> (i32, i32) {
    %c0_i32 = arith.constant 0 : i32
    %c0_i32_0 = arith.constant 0 : i32
    %c0_i32_1 = arith.constant 0 : i32
    return %c0_i32, %c0_i32_0 : i32, i32
  }
  func.func @transform_3(%arg0: i32) -> (i32, i32) {
    %c0_i32 = arith.constant 0 : i32
    %c0_i32_0 = arith.constant 0 : i32
    %c0_i32_1 = arith.constant 0 : i32
    return %c0_i32, %c0_i32_0 : i32, i32
  }
  func.func @transform_4(%arg0: i32) -> (i32, i32) {
    %c0_i32 = arith.constant 0 : i32
    %c0_i32_0 = arith.constant 0 : i32
    %c0_i32_1 = arith.constant 0 : i32
    return %c0_i32, %c0_i32_0 : i32, i32
  }
  func.func @transform_5(%arg0: i32) -> (i32, i32) {
    %c0_i32 = arith.constant 0 : i32
    %c0_i32_0 = arith.constant 0 : i32
    %c0_i32_1 = arith.constant 0 : i32
    return %c0_i32, %c0_i32_0 : i32, i32
  }
  func.func @transform_6(%arg0: i32) -> (i32, i32) {
    %c0_i32 = arith.constant 0 : i32
    %c0_i32_0 = arith.constant 0 : i32
    %c0_i32_1 = arith.constant 0 : i32
    return %c0_i32, %c0_i32_0 : i32, i32
  }
  func.func @transform_7(%arg0: i32) -> (i32, i32) {
    %c0_i32 = arith.constant 0 : i32
    %c0_i32_0 = arith.constant 0 : i32
    %c0_i32_1 = arith.constant 0 : i32
    return %c0_i32, %c0_i32_0 : i32, i32
  }
  func.func @transform_8(%arg0: i32) -> (i32, i32) {
    %c0_i32 = arith.constant 0 : i32
    %c0_i32_0 = arith.constant 0 : i32
    %c0_i32_1 = arith.constant 0 : i32
    return %c0_i32, %c0_i32_0 : i32, i32
  }
  func.func @transform_9(%arg0: i32) -> (i32, i32) {
    %c0_i32 = arith.constant 0 : i32
    %c0_i32_0 = arith.constant 0 : i32
    %c0_i32_1 = arith.constant 0 : i32
    return %c0_i32, %c0_i32_0 : i32, i32
  }
  func.func @transform_10(%arg0: i32) -> (i32, i32) {
    %c0_i32 = arith.constant 0 : i32
    %c0_i32_0 = arith.constant 0 : i32
    %c0_i32_1 = arith.constant 0 : i32
    return %c0_i32, %c0_i32_0 : i32, i32
  }
  func.func @transform_11(%arg0: i32) -> (i32, i32) {
    %c0_i32 = arith.constant 0 : i32
    %c0_i32_0 = arith.constant 0 : i32
    %c0_i32_1 = arith.constant 0 : i32
    return %c0_i32, %c0_i32_0 : i32, i32
  }
  func.func @transform_12(%arg0: i32) -> (i32, i32) {
    %c0_i32 = arith.constant 0 : i32
    %c0_i32_0 = arith.constant 0 : i32
    %c0_i32_1 = arith.constant 0 : i32
    return %c0_i32, %c0_i32_0 : i32, i32
  }
  func.func @transform_13(%arg0: i32) -> (i32, i32, i32) {
    %c0_i32 = arith.constant 0 : i32
    %c0_i32_0 = arith.constant 0 : i32
    %c0_i32_1 = arith.constant 0 : i32
    return %arg0, %c0_i32, %c0_i32_0 : i32, i32, i32
  }
}

</mosaic_0001>

<llo_original>
// kernel: tpu_custom_call.1
$region0: #{tpu_custom_call.1}
  #allocation0 [shape = 'u32[]', space=smem, size = 0x4, offset = 0x4, fixed_abs, tag = 'smem constant byte address 0x4 - core index']
  #allocation1 [shape = 'u32[72,128]{1,0:T(1,128)}', space=vmem, size = 0x9000, scoped, tag = 'internal scratch']
  #allocation2 [shape = 'bf16[2,8,32]{2,1,0:T(8,128)(2,1)}', space=vmem, size = 0x1000, scoped, tag = 'scratch operand']
  %s0 = inlined_call_operand.vmem [shape: f32[2,8,32], index: 0, kind: input, shape index: {}]
  %s1 = inlined_call_operand.vmem [shape: f32[1,32], index: 1, kind: input, shape index: {}]
  %s2 = inlined_call_operand.vmem [shape: f32[1,32], index: 2, kind: input, shape index: {}]
  %s3 = inlined_call_operand.vmem [shape: bf16[32,96], index: 3, kind: input, shape index: {}]
  %s4 = inlined_call_operand.vmem [shape: f32[1,96], index: 4, kind: input, shape index: {}]
  %s5 = inlined_call_operand.vmem [shape: bf16[32,32], index: 5, kind: input, shape index: {}]
  %s6 = inlined_call_operand.vmem [shape: f32[1,32], index: 6, kind: input, shape index: {}]
  %s7 = inlined_call_operand.vmem [shape: f32[1,32], index: 7, kind: input, shape index: {}]
  %s8 = inlined_call_operand.vmem [shape: f32[1,32], index: 8, kind: input, shape index: {}]
  %s9 = inlined_call_operand.vmem [shape: bf16[32,128], index: 9, kind: input, shape index: {}]
  %s10 = inlined_call_operand.vmem [shape: f32[1,128], index: 10, kind: input, shape index: {}]
  %s11 = inlined_call_operand.vmem [shape: bf16[128,32], index: 11, kind: input, shape index: {}]
  %s12 = inlined_call_operand.vmem [shape: f32[1,32], index: 12, kind: input, shape index: {}]
  %s13 = inlined_call_operand.hbm [shape: f32[2,8,32], index: 13, kind: output, shape index: {}]
  %s14 = sld [smem:[#allocation0]]
  $region62: #{tpu_custom_call.1} parent=0
    _
  %s16 = ssub.s32 1, %s14
  %s17 = scalar_select 0, %s16, %s14
  $region1: #{tpu_custom_call.1} parent=0
    #allocation3 [shape = 'u8[8192]{0}', space=vmem, size = 0x2000, scoped, tag = 'output window, operand 0, single buffered']
    #allocation4 [shape = 's32[1]{0}', space=sflag, size = 0x4, scoped, tag = 'scoped memory for tpu_custom_call.1']
    %18 = vsyncpa [#allocation4], 0
    // Predicated region
    $region2: #{tpu_custom_call.1} parent=1 // pred_check
      _
    $region3: #{tpu_custom_call.1} parent=1 // pred_check_branch
      %20 = sbr.rel (0) target = $region5
    $region4: #{tpu_custom_call.1} parent=1 // pred_region
      _
    $region5: #{tpu_custom_call.1} parent=1 // pred_fallthru
      _
    // Predicated region
    $region6: #{tpu_custom_call.1} parent=1 // pred_check
      _
    $region7: #{tpu_custom_call.1} parent=1 // pred_check_branch
      %22 = sbr.rel (0) target = $region9
    $region8: #{tpu_custom_call.1} parent=1 // pred_region
      _
    $region9: #{tpu_custom_call.1} parent=1 // pred_fallthru
      _
    // Predicated region
    $region10: #{tpu_custom_call.1} parent=1 // pred_check
      _
    $region11: #{tpu_custom_call.1} parent=1 // pred_check_branch
      %24 = sbr.rel (0) target = $region13
    $region12: #{tpu_custom_call.1} parent=1 // pred_region
      _
    $region13: #{tpu_custom_call.1} parent=1 // pred_fallthru
      _
    // Predicated region
    $region14: #{tpu_custom_call.1} parent=1 // pred_check
      _
    $region15: #{tpu_custom_call.1} parent=1 // pred_check_branch
      %26 = sbr.rel (0) target = $region17
    $region16: #{tpu_custom_call.1} parent=1 // pred_region
      _
    $region17: #{tpu_custom_call.1} parent=1 // pred_fallthru
      _
    // Predicated region
    $region18: #{tpu_custom_call.1} parent=1 // pred_check
      _
    $region19: #{tpu_custom_call.1} parent=1 // pred_check_branch
      %28 = sbr.rel (0) target = $region21
    $region20: #{tpu_custom_call.1} parent=1 // pred_region
      _
    $region21: #{tpu_custom_call.1} parent=1 // pred_fallthru
      _
    // Predicated region
    $region22: #{tpu_custom_call.1} parent=1 // pred_check
      _
    $region23: #{tpu_custom_call.1} parent=1 // pred_check_branch
      %30 = sbr.rel (0) target = $region25
    $region24: #{tpu_custom_call.1} parent=1 // pred_region
      _
    $region25: #{tpu_custom_call.1} parent=1 // pred_fallthru
      _
    // Predicated region
    $region26: #{tpu_custom_call.1} parent=1 // pred_check
      _
    $region27: #{tpu_custom_call.1} parent=1 // pred_check_branch
      %32 = sbr.rel (0) target = $region29
    $region28: #{tpu_custom_call.1} parent=1 // pred_region
      _
    $region29: #{tpu_custom_call.1} parent=1 // pred_fallthru
      _
    // Predicated region
    $region30: #{tpu_custom_call.1} parent=1 // pred_check
      _
    $region31: #{tpu_custom_call.1} parent=1 // pred_check_branch
      %34 = sbr.rel (0) target = $region33
    $region32: #{tpu_custom_call.1} parent=1 // pred_region
      _
    $region33: #{tpu_custom_call.1} parent=1 // pred_fallthru
      _
    // Predicated region
    $region34: #{tpu_custom_call.1} parent=1 // pred_check
      _
    $region35: #{tpu_custom_call.1} parent=1 // pred_check_branch
      %36 = sbr.rel (0) target = $region37
    $region36: #{tpu_custom_call.1} parent=1 // pred_region
      _
    $region37: #{tpu_custom_call.1} parent=1 // pred_fallthru
      _
    // Predicated region
    $region38: #{tpu_custom_call.1} parent=1 // pred_check
      _
    $region39: #{tpu_custom_call.1} parent=1 // pred_check_branch
      %38 = sbr.rel (0) target = $region41
    $region40: #{tpu_custom_call.1} parent=1 // pred_region
      _
    $region41: #{tpu_custom_call.1} parent=1 // pred_fallthru
      _
    // Predicated region
    $region42: #{tpu_custom_call.1} parent=1 // pred_check
      _
    $region43: #{tpu_custom_call.1} parent=1 // pred_check_branch
      %40 = sbr.rel (0) target = $region45
    $region44: #{tpu_custom_call.1} parent=1 // pred_region
      _
    $region45: #{tpu_custom_call.1} parent=1 // pred_fallthru
      _
    // Predicated region
    $region46: #{tpu_custom_call.1} parent=1 // pred_check
      _
    $region47: #{tpu_custom_call.1} parent=1 // pred_check_branch
      %42 = sbr.rel (0) target = $region49
    $region48: #{tpu_custom_call.1} parent=1 // pred_region
      _
    $region49: #{tpu_custom_call.1} parent=1 // pred_fallthru
      _
    // Predicated region
    $region50: #{tpu_custom_call.1} parent=1 // pred_check
      _
    $region51: #{tpu_custom_call.1} parent=1 // pred_check_branch
      %44 = sbr.rel (0) target = $region53
    $region52: #{tpu_custom_call.1} parent=1 // pred_region
      _
    $region53: #{tpu_custom_call.1} parent=1 // pred_fallthru
      _
    %v46 = vld [vmem:[%s0] sm:$0xff]
    %v47 = vld [vmem:[%s0 + $0x8] sm:$0xff]
    %v48 = vld [vmem:[%s1] sm:$0x1]
    %v49 = vld [vmem:[%s2] sm:$0x1]
    %vm50 = vcmask 261120
    %v51 = vsel %vm50, %v46, 0.0
    %52 = vadd.xlane.f32.xlu0 %v51
    %v53 = vpop.xlane.xlu0 %52
    %v54 = vsel %vm50, %v47, 0.0
    %55 = vadd.xlane.f32.xlu0 %v54
    %v56 = vpop.xlane.xlu0 %55
    %v57 = vrcp.pop 32.0
    %v58 = vmul.f32 32.0, %v57
    %v59 = vsub.f32 1.0, %v58
    %v60 = vmul.f32 %v57, %v59
    %v61 = vadd.f32 %v57, %v60
    %vm62 = vweird.f32 %v57
    %v63 = vsel %vm62, %v57, %v61
    %v64 = vmul.f32 %v53, %v63
    %v65 = vmul.f32 %v56, %v63
    %v66 = vsub.f32 %v46, %v64
    %v67 = vsub.f32 %v47, %v65
    %v68 = vmul.f32 %v66, %v66
    %v69 = vmul.f32 %v67, %v67
    %v70 = vsel %vm50, %v68, 0.0
    %71 = vadd.xlane.f32.xlu0 %v70
    %v72 = vpop.xlane.xlu0 %71
    %v73 = vsel %vm50, %v69, 0.0
    %74 = vadd.xlane.f32.xlu0 %v73
    %v75 = vpop.xlane.xlu0 %74
    %v76 = vmul.f32 %v72, %v63
    %v77 = vmul.f32 %v75, %v63
    %v78 = vadd.f32 %v76, 1e-05
    %v79 = vadd.f32 %v77, 1e-05
    %v80 = vrsqrt.pop %v78
    %v81 = vmul.f32 %v80, %v78
    %v82 = vmul.f32 %v81, %v80
    %v83 = vmul.f32 0.5, %v82
    %v84 = vsub.f32 1.5, %v83
    %v85 = vmul.f32 %v80, %v84
    %vm86 = vweird.f32 %v78
    %vm87 = vweird.f32 %v80
    %vm88 = vmor %vm86, %vm87
    %v89 = vsel %vm88, %v80, %v85
    %v90 = vrsqrt.pop %v79
    %v91 = vmul.f32 %v90, %v79
    %v92 = vmul.f32 %v91, %v90
    %v93 = vmul.f32 0.5, %v92
    %v94 = vsub.f32 1.5, %v93
    %v95 = vmul.f32 %v90, %v94
    %vm96 = vweird.f32 %v79
    %vm97 = vweird.f32 %v90
    %vm98 = vmor %vm96, %vm97
    %v99 = vsel %vm98, %v90, %v95
    %v100 = vmul.f32 %v66, %v89
    %v101 = vmul.f32 %v67, %v99
    %v103 = vperm.slane %v48, 0
    %v105 = vmul.f32 %v100, %v103
    %v106 = vmul.f32 %v101, %v103
    %v108 = vperm.slane %v49, 0
    %v110 = vadd.f32 %v105, %v108
    %v111 = vadd.f32 %v106, %v108
    %v112 = vpack.c.bf16 %v111, %v110
    %v113 = vld [vmem:[%s3] sm:$0xf]
    %v114 = vld [vmem:[%s3 + $0x4] sm:$0xf]
    %v115 = vld [vmem:[%s3 + $0x8] sm:$0xf]
    %v116 = vld [vmem:[%s3 + $0xc] sm:$0xf]
    %v117 = vld [vmem:[%s4] sm:$0x1]
    %v119 = vperm.slane %v117, 0
    %v125 = vunpack.c.l.b16 %v113
    %v126 = vunpack.c.l.b16 %v114
    %v127 = vunpack.c.l.b16 %v115
    %v128 = vunpack.c.l.b16 %v116
    %v129 = vpack.c.b16 %v126, %v125
    %v130 = vpack.c.b16 %v128, %v127
    %v134 = vsel %vm50, %v112, 0
    %136 = vmatpush.bf16.msra.mxu0 0
    %137 = vmatpush.bf16.msra.mxu0 0
    %138 = vmatpush.bf16.msra.mxu0 0
    %139 = vmatpush.bf16.msra.mxu0 0
    %140 = vmatpush.bf16.msra.mxu0 0
    %141 = vmatpush.bf16.msra.mxu0 0
    %142 = vmatpush.bf16.msra.mxu0 %v130
    %143 = vmatpush.bf16.msra.mxu0 %v129
    %144 = vmatmul.bf16.gmra.mxu0 %v134
    %v145 = vpop.f32.mrf.mxu0
    %v146 = vadd.f32 %v119, %v145
    %v147 = vpop.f32.mrf.mxu0
    %v148 = vadd.f32 %v119, %v147
    %149 = vdwg.mxu0
    %v150 = vpack.c.bf16 %v146, %v146
    %v151 = vpack.c.bf16 %v148, %v148
    %v152 = vlaneseq
    %v153 = vshrl.u32 %v152, 7
    %v154 = vlaneseq
    %v155 = vand.u32 %v154, 127
    %vm156 = vcmp.gt.s32.totalorder %v155, %v153
    %v158 = vunpack.c.l.b16 %v150
    %v159 = vpack.c.b16 %v158, %v158
    %160 = vrot.lane.b32.xlu0 %v159, 96
    %v161 = vpop.permute.xlu0 %160
    %vm162 = vcmask 64512
    %v164 = vsel %vm162, %v150, 0
    %v167 = vsel %vm162, %v161, 0
    %169 = vmatpush.bf16.xpose.msra.mxu0 0
    %170 = vmatpush.bf16.xpose.msra.mxu0 0
    %171 = vmatpush.bf16.xpose.msra.mxu0 0
    %172 = vmatpush.bf16.xpose.msra.mxu0 0
    %173 = vmatpush.bf16.xpose.msra.mxu0 0
    %174 = vmatpush.bf16.xpose.msra.mxu0 0
    %175 = vmatpush.bf16.xpose.msra.mxu0 0
    %176 = vmatpush.bf16.xpose.msra.mxu0 %v167
    %177 = vmatmul.bf16.gmra.mxu0 %v164
    %v178 = vpop.f32.mrf.mxu0
    %v179 = vadd.f32 0.0, %v178
    %v180 = vpop.f32.mrf.mxu0
    %181 = vdwg.mxu0
    %v182 = vsel %vm156, -1e+30, %v179
    %v183 = vsel %vm162, %v182, -inf
    %184 = vmax.xlane.f32.xlu0 %v183
    %v185 = vpop.xlane.xlu0 %184
    %v186 = vsub.f32 %v182, %v185
    %v187 = vmul.f32 %v186, 1.442695
    %v188 = vpow.pop %v187
    %v189 = vsel %vm162, %v188, 0.0
    %190 = vadd.xlane.f32.xlu0 %v189
    %v191 = vpop.xlane.xlu0 %190
    %v192 = vrcp.pop %v191
    %v193 = vmul.f32 %v188, %v192
    %v194 = vpack.c.bf16 %v193, %v193
    %195 = vrot.lane.b32.xlu0 %v159, 64
    %v196 = vpop.permute.xlu0 %195
    %v198 = vsel %vm162, %v194, 0
    %vm200 = vcmask 1043456
    %v202 = vsel %vm200, %v196, 0
    %204 = vmatpush.bf16.msra.mxu0 0
    %205 = vmatpush.bf16.msra.mxu0 0
    %206 = vmatpush.bf16.msra.mxu0 0
    %207 = vmatpush.bf16.msra.mxu0 0
    %208 = vmatpush.bf16.msra.mxu0 0
    %209 = vmatpush.bf16.msra.mxu0 0
    %210 = vmatpush.bf16.msra.mxu0 0
    %211 = vmatpush.bf16.msra.mxu0 %v202
    %212 = vmatmul.bf16.gmra.mxu0 %v198
    %v213 = vpop.f32.mrf.mxu0
    %v214 = vadd.f32 0.0, %v213
    %v215 = vpop.f32.mrf.mxu0
    %216 = vdwg.mxu0
    %v217 = vpack.c.bf16 %v214, %v214
    %218 = vrot.lane.b32.xlu0 %v159, 120
    %v219 = vpop.permute.xlu0 %218
    %220 = vrot.lane.b32.xlu0 %v159, 88
    %v221 = vpop.permute.xlu0 %220
    %v223 = vsel %vm162, %v219, 0
    %v226 = vsel %vm162, %v221, 0
    %228 = vmatpush.bf16.xpose.msra.mxu0 0
    %229 = vmatpush.bf16.xpose.msra.mxu0 0
    %230 = vmatpush.bf16.xpose.msra.mxu0 0
    %231 = vmatpush.bf16.xpose.msra.mxu0 0
    %232 = vmatpush.bf16.xpose.msra.mxu0 0
    %233 = vmatpush.bf16.xpose.msra.mxu0 0
    %234 = vmatpush.bf16.xpose.msra.mxu0 0
    %235 = vmatpush.bf16.xpose.msra.mxu0 %v226
    %236 = vmatmul.bf16.gmra.mxu0 %v223
    %v237 = vpop.f32.mrf.mxu0
    %v238 = vadd.f32 0.0, %v237
    %v239 = vpop.f32.mrf.mxu0
    %240 = vdwg.mxu0
    %v241 = vsel %vm156, -1e+30, %v238
    %v242 = vsel %vm162, %v241, -inf
    %243 = vmax.xlane.f32.xlu0 %v242
    %v244 = vpop.xlane.xlu0 %243
    %v245 = vsub.f32 %v241, %v244
    %v246 = vmul.f32 %v245, 1.442695
    %v247 = vpow.pop %v246
    %v248 = vsel %vm162, %v247, 0.0
    %249 = vadd.xlane.f32.xlu0 %v248
    %v250 = vpop.xlane.xlu0 %249
    %v251 = vrcp.pop %v250
    %v252 = vmul.f32 %v247, %v251
    %v253 = vpack.c.bf16 %v252, %v252
    %254 = vrot.lane.b32.xlu0 %v159, 56
    %v255 = vpop.permute.xlu0 %254
    %v257 = vsel %vm162, %v253, 0
    %v260 = vsel %vm200, %v255, 0
    %262 = vmatpush.bf16.msra.mxu0 0
    %263 = vmatpush.bf16.msra.mxu0 0
    %264 = vmatpush.bf16.msra.mxu0 0
    %265 = vmatpush.bf16.msra.mxu0 0
    %266 = vmatpush.bf16.msra.mxu0 0
    %267 = vmatpush.bf16.msra.mxu0 0
    %268 = vmatpush.bf16.msra.mxu0 0
    %269 = vmatpush.bf16.msra.mxu0 %v260
    %270 = vmatmul.bf16.gmra.mxu0 %v257
    %v271 = vpop.f32.mrf.mxu0
    %v272 = vadd.f32 0.0, %v271
    %v273 = vpop.f32.mrf.mxu0
    %274 = vdwg.mxu0
    %v275 = vpack.c.bf16 %v272, %v272
    %276 = vrot.lane.b32.xlu0 %v159, 112
    %v277 = vpop.permute.xlu0 %276
    %278 = vrot.lane.b32.xlu0 %v159, 80
    %v279 = vpop.permute.xlu0 %278
    %v281 = vsel %vm162, %v277, 0
    %v284 = vsel %vm162, %v279, 0
    %286 = vmatpush.bf16.xpose.msra.mxu0 0
    %287 = vmatpush.bf16.xpose.msra.mxu0 0
    %288 = vmatpush.bf16.xpose.msra.mxu0 0
    %289 = vmatpush.bf16.xpose.msra.mxu0 0
    %290 = vmatpush.bf16.xpose.msra.mxu0 0
    %291 = vmatpush.bf16.xpose.msra.mxu0 0
    %292 = vmatpush.bf16.xpose.msra.mxu0 0
    %293 = vmatpush.bf16.xpose.msra.mxu0 %v284
    %294 = vmatmul.bf16.gmra.mxu0 %v281
    %v295 = vpop.f32.mrf.mxu0
    %v296 = vadd.f32 0.0, %v295
    %v297 = vpop.f32.mrf.mxu0
    %298 = vdwg.mxu0
    %v299 = vsel %vm156, -1e+30, %v296
    %v300 = vsel %vm162, %v299, -inf
    %301 = vmax.xlane.f32.xlu0 %v300
    %v302 = vpop.xlane.xlu0 %301
    %v303 = vsub.f32 %v299, %v302
    %v304 = vmul.f32 %v303, 1.442695
    %v305 = vpow.pop %v304
    %v306 = vsel %vm162, %v305, 0.0
    %307 = vadd.xlane.f32.xlu0 %v306
    %v308 = vpop.xlane.xlu0 %307
    %v309 = vrcp.pop %v308
    %v310 = vmul.f32 %v305, %v309
    %v311 = vpack.c.bf16 %v310, %v310
    %312 = vrot.lane.b32.xlu0 %v159, 48
    %v313 = vpop.permute.xlu0 %312
    %v315 = vsel %vm162, %v311, 0
    %v318 = vsel %vm200, %v313, 0
    %320 = vmatpush.bf16.msra.mxu0 0
    %321 = vmatpush.bf16.msra.mxu0 0
    %322 = vmatpush.bf16.msra.mxu0 0
    %323 = vmatpush.bf16.msra.mxu0 0
    %324 = vmatpush.bf16.msra.mxu0 0
    %325 = vmatpush.bf16.msra.mxu0 0
    %326 = vmatpush.bf16.msra.mxu0 0
    %327 = vmatpush.bf16.msra.mxu0 %v318
    %328 = vmatmul.bf16.gmra.mxu0 %v315
    %v329 = vpop.f32.mrf.mxu0
    %v330 = vadd.f32 0.0, %v329
    %v331 = vpop.f32.mrf.mxu0
    %332 = vdwg.mxu0
    %v333 = vpack.c.bf16 %v330, %v330
    %334 = vrot.lane.b32.xlu0 %v159, 104
    %v335 = vpop.permute.xlu0 %334
    %336 = vrot.lane.b32.xlu0 %v159, 72
    %v337 = vpop.permute.xlu0 %336
    %v339 = vsel %vm162, %v335, 0
    %v342 = vsel %vm162, %v337, 0
    %344 = vmatpush.bf16.xpose.msra.mxu0 0
    %345 = vmatpush.bf16.xpose.msra.mxu0 0
    %346 = vmatpush.bf16.xpose.msra.mxu0 0
    %347 = vmatpush.bf16.xpose.msra.mxu0 0
    %348 = vmatpush.bf16.xpose.msra.mxu0 0
    %349 = vmatpush.bf16.xpose.msra.mxu0 0
    %350 = vmatpush.bf16.xpose.msra.mxu0 0
    %351 = vmatpush.bf16.xpose.msra.mxu0 %v342
    %352 = vmatmul.bf16.gmra.mxu0 %v339
    %v353 = vpop.f32.mrf.mxu0
    %v354 = vadd.f32 0.0, %v353
    %v355 = vpop.f32.mrf.mxu0
    %356 = vdwg.mxu0
    %v357 = vsel %vm156, -1e+30, %v354
    %v358 = vsel %vm162, %v357, -inf
    %359 = vmax.xlane.f32.xlu0 %v358
    %v360 = vpop.xlane.xlu0 %359
    %v361 = vsub.f32 %v357, %v360
    %v362 = vmul.f32 %v361, 1.442695
    %v363 = vpow.pop %v362
    %v364 = vsel %vm162, %v363, 0.0
    %365 = vadd.xlane.f32.xlu0 %v364
    %v366 = vpop.xlane.xlu0 %365
    %v367 = vrcp.pop %v366
    %v368 = vmul.f32 %v363, %v367
    %v369 = vpack.c.bf16 %v368, %v368
    %370 = vrot.lane.b32.xlu0 %v159, 40
    %v371 = vpop.permute.xlu0 %370
    %v373 = vsel %vm162, %v369, 0
    %v376 = vsel %vm200, %v371, 0
    %378 = vmatpush.bf16.msra.mxu0 0
    %379 = vmatpush.bf16.msra.mxu0 0
    %380 = vmatpush.bf16.msra.mxu0 0
    %381 = vmatpush.bf16.msra.mxu0 0
    %382 = vmatpush.bf16.msra.mxu0 0
    %383 = vmatpush.bf16.msra.mxu0 0
    %384 = vmatpush.bf16.msra.mxu0 0
    %385 = vmatpush.bf16.msra.mxu0 %v376
    %386 = vmatmul.bf16.gmra.mxu0 %v373
    %v387 = vpop.f32.mrf.mxu0
    %v388 = vadd.f32 0.0, %v387
    %v389 = vpop.f32.mrf.mxu0
    %390 = vdwg.mxu0
    %v391 = vpack.c.bf16 %v388, %v388
    %v393 = vunpack.c.l.b16 %v275
    %v394 = vpack.c.b16 %v393, %v393
    %395 = vrot.lane.b32.xlu0 %v394, 8
    %v396 = vpop.permute.xlu0 %395
    %v398 = vunpack.c.l.b16 %v333
    %v399 = vpack.c.b16 %v398, %v398
    %400 = vrot.lane.b32.xlu0 %v399, 16
    %v401 = vpop.permute.xlu0 %400
    %v403 = vunpack.c.l.b16 %v391
    %v404 = vpack.c.b16 %v403, %v403
    %405 = vrot.lane.b32.xlu0 %v404, 24
    %v406 = vpop.permute.xlu0 %405
    %v409 = vsel %vm162, %v217, %v396
    %vm410 = vcmask 130048
    %v412 = vsel %vm410, %v409, %v401
    %vm413 = vcmask 195584
    %v415 = vsel %vm413, %v412, %v406
    %vm417 = vcmask 257024
    %418 = vst.msk [vmem:[#allocation2] sm:$0xf] %vm417, %v415
    %v420 = vunpack.c.l.b16 %v151
    %v421 = vpack.c.b16 %v420, %v420
    %422 = vrot.lane.b32.xlu0 %v421, 96
    %v423 = vpop.permute.xlu0 %422
    %v425 = vsel %vm162, %v151, 0
    %v428 = vsel %vm162, %v423, 0
    %430 = vmatpush.bf16.xpose.msra.mxu0 0
    %431 = vmatpush.bf16.xpose.msra.mxu0 0
    %432 = vmatpush.bf16.xpose.msra.mxu0 0
    %433 = vmatpush.bf16.xpose.msra.mxu0 0
    %434 = vmatpush.bf16.xpose.msra.mxu0 0
    %435 = vmatpush.bf16.xpose.msra.mxu0 0
    %436 = vmatpush.bf16.xpose.msra.mxu0 0
    %437 = vmatpush.bf16.xpose.msra.mxu0 %v428
    %438 = vmatmul.bf16.gmra.mxu0 %v425
    %v439 = vpop.f32.mrf.mxu0
    %v440 = vadd.f32 0.0, %v439
    %v441 = vpop.f32.mrf.mxu0
    %442 = vdwg.mxu0
    %v443 = vsel %vm156, -1e+30, %v440
    %v444 = vsel %vm162, %v443, -inf
    %445 = vmax.xlane.f32.xlu0 %v444
    %v446 = vpop.xlane.xlu0 %445
    %v447 = vsub.f32 %v443, %v446
    %v448 = vmul.f32 %v447, 1.442695
    %v449 = vpow.pop %v448
    %v450 = vsel %vm162, %v449, 0.0
    %451 = vadd.xlane.f32.xlu0 %v450
    %v452 = vpop.xlane.xlu0 %451
    %v453 = vrcp.pop %v452
    %v454 = vmul.f32 %v449, %v453
    %v455 = vpack.c.bf16 %v454, %v454
    %456 = vrot.lane.b32.xlu0 %v421, 64
    %v457 = vpop.permute.xlu0 %456
    %v459 = vsel %vm162, %v455, 0
    %v462 = vsel %vm200, %v457, 0
    %464 = vmatpush.bf16.msra.mxu0 0
    %465 = vmatpush.bf16.msra.mxu0 0
    %466 = vmatpush.bf16.msra.mxu0 0
    %467 = vmatpush.bf16.msra.mxu0 0
    %468 = vmatpush.bf16.msra.mxu0 0
    %469 = vmatpush.bf16.msra.mxu0 0
    %470 = vmatpush.bf16.msra.mxu0 0
    %471 = vmatpush.bf16.msra.mxu0 %v462
    %472 = vmatmul.bf16.gmra.mxu0 %v459
    %v473 = vpop.f32.mrf.mxu0
    %v474 = vadd.f32 0.0, %v473
    %v475 = vpop.f32.mrf.mxu0
    %476 = vdwg.mxu0
    %v477 = vpack.c.bf16 %v474, %v474
    %478 = vrot.lane.b32.xlu0 %v421, 120
    %v479 = vpop.permute.xlu0 %478
    %480 = vrot.lane.b32.xlu0 %v421, 88
    %v481 = vpop.permute.xlu0 %480
    %v483 = vsel %vm162, %v479, 0
    %v486 = vsel %vm162, %v481, 0
    %488 = vmatpush.bf16.xpose.msra.mxu0 0
    %489 = vmatpush.bf16.xpose.msra.mxu0 0
    %490 = vmatpush.bf16.xpose.msra.mxu0 0
    %491 = vmatpush.bf16.xpose.msra.mxu0 0
    %492 = vmatpush.bf16.xpose.msra.mxu0 0
    %493 = vmatpush.bf16.xpose.msra.mxu0 0
    %494 = vmatpush.bf16.xpose.msra.mxu0 0
    %495 = vmatpush.bf16.xpose.msra.mxu0 %v486
    %496 = vmatmul.bf16.gmra.mxu0 %v483
    %v497 = vpop.f32.mrf.mxu0
    %v498 = vadd.f32 0.0, %v497
    %v499 = vpop.f32.mrf.mxu0
    %500 = vdwg.mxu0
    %v501 = vsel %vm156, -1e+30, %v498
    %v502 = vsel %vm162, %v501, -inf
    %503 = vmax.xlane.f32.xlu0 %v502
    %v504 = vpop.xlane.xlu0 %503
    %v505 = vsub.f32 %v501, %v504
    %v506 = vmul.f32 %v505, 1.442695
    %v507 = vpow.pop %v506
    %v508 = vsel %vm162, %v507, 0.0
    %509 = vadd.xlane.f32.xlu0 %v508
    %v510 = vpop.xlane.xlu0 %509
    %v511 = vrcp.pop %v510
    %v512 = vmul.f32 %v507, %v511
    %v513 = vpack.c.bf16 %v512, %v512
    %514 = vrot.lane.b32.xlu0 %v421, 56
    %v515 = vpop.permute.xlu0 %514
    %v517 = vsel %vm162, %v513, 0
    %v520 = vsel %vm200, %v515, 0
    %522 = vmatpush.bf16.msra.mxu0 0
    %523 = vmatpush.bf16.msra.mxu0 0
    %524 = vmatpush.bf16.msra.mxu0 0
    %525 = vmatpush.bf16.msra.mxu0 0
    %526 = vmatpush.bf16.msra.mxu0 0
    %527 = vmatpush.bf16.msra.mxu0 0
    %528 = vmatpush.bf16.msra.mxu0 0
    %529 = vmatpush.bf16.msra.mxu0 %v520
    %530 = vmatmul.bf16.gmra.mxu0 %v517
    %v531 = vpop.f32.mrf.mxu0
    %v532 = vadd.f32 0.0, %v531
    %v533 = vpop.f32.mrf.mxu0
    %534 = vdwg.mxu0
    %v535 = vpack.c.bf16 %v532, %v532
    %536 = vrot.lane.b32.xlu0 %v421, 112
    %v537 = vpop.permute.xlu0 %536
    %538 = vrot.lane.b32.xlu0 %v421, 80
    %v539 = vpop.permute.xlu0 %538
    %v541 = vsel %vm162, %v537, 0
    %v544 = vsel %vm162, %v539, 0
    %546 = vmatpush.bf16.xpose.msra.mxu0 0
    %547 = vmatpush.bf16.xpose.msra.mxu0 0
    %548 = vmatpush.bf16.xpose.msra.mxu0 0
    %549 = vmatpush.bf16.xpose.msra.mxu0 0
    %550 = vmatpush.bf16.xpose.msra.mxu0 0
    %551 = vmatpush.bf16.xpose.msra.mxu0 0
    %552 = vmatpush.bf16.xpose.msra.mxu0 0
    %553 = vmatpush.bf16.xpose.msra.mxu0 %v544
    %554 = vmatmul.bf16.gmra.mxu0 %v541
    %v555 = vpop.f32.mrf.mxu0
    %v556 = vadd.f32 0.0, %v555
    %v557 = vpop.f32.mrf.mxu0
    %558 = vdwg.mxu0
    %v559 = vsel %vm156, -1e+30, %v556
    %v560 = vsel %vm162, %v559, -inf
    %561 = vmax.xlane.f32.xlu0 %v560
    %v562 = vpop.xlane.xlu0 %561
    %v563 = vsub.f32 %v559, %v562
    %v564 = vmul.f32 %v563, 1.442695
    %v565 = vpow.pop %v564
    %v566 = vsel %vm162, %v565, 0.0
    %567 = vadd.xlane.f32.xlu0 %v566
    %v568 = vpop.xlane.xlu0 %567
    %v569 = vrcp.pop %v568
    %v570 = vmul.f32 %v565, %v569
    %v571 = vpack.c.bf16 %v570, %v570
    %572 = vrot.lane.b32.xlu0 %v421, 48
    %v573 = vpop.permute.xlu0 %572
    %v575 = vsel %vm162, %v571, 0
    %v578 = vsel %vm200, %v573, 0
    %580 = vmatpush.bf16.msra.mxu0 0
    %581 = vmatpush.bf16.msra.mxu0 0
    %582 = vmatpush.bf16.msra.mxu0 0
    %583 = vmatpush.bf16.msra.mxu0 0
    %584 = vmatpush.bf16.msra.mxu0 0
    %585 = vmatpush.bf16.msra.mxu0 0
    %586 = vmatpush.bf16.msra.mxu0 0
    %587 = vmatpush.bf16.msra.mxu0 %v578
    %588 = vmatmul.bf16.gmra.mxu0 %v575
    %v589 = vpop.f32.mrf.mxu0
    %v590 = vadd.f32 0.0, %v589
    %v591 = vpop.f32.mrf.mxu0
    %592 = vdwg.mxu0
    %v593 = vpack.c.bf16 %v590, %v590
    %594 = vrot.lane.b32.xlu0 %v421, 104
    %v595 = vpop.permute.xlu0 %594
    %596 = vrot.lane.b32.xlu0 %v421, 72
    %v597 = vpop.permute.xlu0 %596
    %v599 = vsel %vm162, %v595, 0
    %v602 = vsel %vm162, %v597, 0
    %604 = vmatpush.bf16.xpose.msra.mxu0 0
    %605 = vmatpush.bf16.xpose.msra.mxu0 0
    %606 = vmatpush.bf16.xpose.msra.mxu0 0
    %607 = vmatpush.bf16.xpose.msra.mxu0 0
    %608 = vmatpush.bf16.xpose.msra.mxu0 0
    %609 = vmatpush.bf16.xpose.msra.mxu0 0
    %610 = vmatpush.bf16.xpose.msra.mxu0 0
    %611 = vmatpush.bf16.xpose.msra.mxu0 %v602
    %612 = vmatmul.bf16.gmra.mxu0 %v599
    %v613 = vpop.f32.mrf.mxu0
    %v614 = vadd.f32 0.0, %v613
    %v615 = vpop.f32.mrf.mxu0
    %616 = vdwg.mxu0
    %v617 = vsel %vm156, -1e+30, %v614
    %v618 = vsel %vm162, %v617, -inf
    %619 = vmax.xlane.f32.xlu0 %v618
    %v620 = vpop.xlane.xlu0 %619
    %v621 = vsub.f32 %v617, %v620
    %v622 = vmul.f32 %v621, 1.442695
    %v623 = vpow.pop %v622
    %v624 = vsel %vm162, %v623, 0.0
    %625 = vadd.xlane.f32.xlu0 %v624
    %v626 = vpop.xlane.xlu0 %625
    %v627 = vrcp.pop %v626
    %v628 = vmul.f32 %v623, %v627
    %v629 = vpack.c.bf16 %v628, %v628
    %630 = vrot.lane.b32.xlu0 %v421, 40
    %v631 = vpop.permute.xlu0 %630
    %v633 = vsel %vm162, %v629, 0
    %v636 = vsel %vm200, %v631, 0
    %638 = vmatpush.bf16.msra.mxu0 0
    %639 = vmatpush.bf16.msra.mxu0 0
    %640 = vmatpush.bf16.msra.mxu0 0
    %641 = vmatpush.bf16.msra.mxu0 0
    %642 = vmatpush.bf16.msra.mxu0 0
    %643 = vmatpush.bf16.msra.mxu0 0
    %644 = vmatpush.bf16.msra.mxu0 0
    %645 = vmatpush.bf16.msra.mxu0 %v636
    %646 = vmatmul.bf16.gmra.mxu0 %v633
    %v647 = vpop.f32.mrf.mxu0
    %v648 = vadd.f32 0.0, %v647
    %v649 = vpop.f32.mrf.mxu0
    %650 = vdwg.mxu0
    %v651 = vpack.c.bf16 %v648, %v648
    %v653 = vunpack.c.l.b16 %v535
    %v654 = vpack.c.b16 %v653, %v653
    %655 = vrot.lane.b32.xlu0 %v654, 8
    %v656 = vpop.permute.xlu0 %655
    %v658 = vunpack.c.l.b16 %v593
    %v659 = vpack.c.b16 %v658, %v658
    %660 = vrot.lane.b32.xlu0 %v659, 16
    %v661 = vpop.permute.xlu0 %660
    %v663 = vunpack.c.l.b16 %v651
    %v664 = vpack.c.b16 %v663, %v663
    %665 = vrot.lane.b32.xlu0 %v664, 24
    %v666 = vpop.permute.xlu0 %665
    %v669 = vsel %vm162, %v477, %v656
    %v671 = vsel %vm410, %v669, %v661
    %v673 = vsel %vm413, %v671, %v666
    %s675 = scalar_lea.vmem [#allocation2], 4
    %676 = vst.msk [vmem:[%s675] sm:$0xf] %vm417, %v673
    %v677 = vld [vmem:[#allocation2] sm:$0xf]
    %v678 = vld [vmem:[#allocation2 + $0x4] sm:$0xf]
    %v679 = vld [vmem:[%s5] sm:$0xf]
    %v680 = vld [vmem:[%s5 + $0x4] sm:$0xf]
    %v681 = vld [vmem:[%s5 + $0x8] sm:$0xf]
    %v682 = vld [vmem:[%s5 + $0xc] sm:$0xf]
    %v683 = vld [vmem:[%s6] sm:$0x1]
    %v685 = vperm.slane %v683, 0
    %v689 = vunpack.c.l.b16 %v677
    %v690 = vunpack.c.l.b16 %v678
    %v691 = vpack.c.b16 %v690, %v689
    %v696 = vunpack.c.l.b16 %v679
    %v697 = vunpack.c.l.b16 %v680
    %v698 = vunpack.c.l.b16 %v681
    %v699 = vunpack.c.l.b16 %v682
    %v700 = vpack.c.b16 %v697, %v696
    %v701 = vpack.c.b16 %v699, %v698
    %v705 = vsel %vm50, %v691, 0
    %707 = vmatpush.bf16.msra.mxu0 0
    %708 = vmatpush.bf16.msra.mxu0 0
    %709 = vmatpush.bf16.msra.mxu0 0
    %710 = vmatpush.bf16.msra.mxu0 0
    %711 = vmatpush.bf16.msra.mxu0 0
    %712 = vmatpush.bf16.msra.mxu0 0
    %713 = vmatpush.bf16.msra.mxu0 %v701
    %714 = vmatpush.bf16.msra.mxu0 %v700
    %715 = vmatmul.bf16.gmra.mxu0 %v705
    %v716 = vpop.f32.mrf.mxu0
    %v717 = vadd.f32 %v685, %v716
    %v718 = vpop.f32.mrf.mxu0
    %v719 = vadd.f32 %v685, %v718
    %720 = vdwg.mxu0
    %v721 = vadd.f32 %v46, %v717
    %v722 = vadd.f32 %v47, %v719
    %v723 = vld [vmem:[%s7] sm:$0x1]
    %v724 = vld [vmem:[%s8] sm:$0x1]
    %v725 = vsel %vm50, %v721, 0.0
    %726 = vadd.xlane.f32.xlu0 %v725
    %v727 = vpop.xlane.xlu0 %726
    %v728 = vsel %vm50, %v722, 0.0
    %729 = vadd.xlane.f32.xlu0 %v728
    %v730 = vpop.xlane.xlu0 %729
    %v731 = vmul.f32 %v727, %v63
    %v732 = vmul.f32 %v730, %v63
    %v733 = vsub.f32 %v721, %v731
    %v734 = vsub.f32 %v722, %v732
    %v735 = vmul.f32 %v733, %v733
    %v736 = vmul.f32 %v734, %v734
    %v737 = vsel %vm50, %v735, 0.0
    %738 = vadd.xlane.f32.xlu0 %v737
    %v739 = vpop.xlane.xlu0 %738
    %v740 = vsel %vm50, %v736, 0.0
    %741 = vadd.xlane.f32.xlu0 %v740
    %v742 = vpop.xlane.xlu0 %741
    %v743 = vmul.f32 %v739, %v63
    %v744 = vmul.f32 %v742, %v63
    %v745 = vadd.f32 %v743, 1e-05
    %v746 = vadd.f32 %v744, 1e-05
    %v747 = vrsqrt.pop %v745
    %v748 = vmul.f32 %v747, %v745
    %v749 = vmul.f32 %v748, %v747
    %v750 = vmul.f32 0.5, %v749
    %v751 = vsub.f32 1.5, %v750
    %v752 = vmul.f32 %v747, %v751
    %vm753 = vweird.f32 %v745
    %vm754 = vweird.f32 %v747
    %vm755 = vmor %vm753, %vm754
    %v756 = vsel %vm755, %v747, %v752
    %v757 = vrsqrt.pop %v746
    %v758 = vmul.f32 %v757, %v746
    %v759 = vmul.f32 %v758, %v757
    %v760 = vmul.f32 0.5, %v759
    %v761 = vsub.f32 1.5, %v760
    %v762 = vmul.f32 %v757, %v761
    %vm763 = vweird.f32 %v746
    %vm764 = vweird.f32 %v757
    %vm765 = vmor %vm763, %vm764
    %v766 = vsel %vm765, %v757, %v762
    %v767 = vmul.f32 %v733, %v756
    %v768 = vmul.f32 %v734, %v766
    %v770 = vperm.slane %v723, 0
    %v772 = vmul.f32 %v767, %v770
    %v773 = vmul.f32 %v768, %v770
    %v775 = vperm.slane %v724, 0
    %v777 = vadd.f32 %v772, %v775
    %v778 = vadd.f32 %v773, %v775
    %v779 = vpack.c.bf16 %v778, %v777
    %v780 = vld [vmem:[%s9] sm:$0xf]
    %v781 = vld [vmem:[%s9 + $0x4] sm:$0xf]
    %v782 = vld [vmem:[%s9 + $0x8] sm:$0xf]
    %v783 = vld [vmem:[%s9 + $0xc] sm:$0xf]
    %v784 = vld [vmem:[%s10] sm:$0x1]
    %v786 = vperm.slane %v784, 0
    %v792 = vunpack.c.l.b16 %v780
    %v793 = vunpack.c.l.b16 %v781
    %v794 = vunpack.c.l.b16 %v782
    %v795 = vunpack.c.l.b16 %v783
    %v796 = vpack.c.b16 %v793, %v792
    %v797 = vpack.c.b16 %v795, %v794
    %v801 = vsel %vm50, %v779, 0
    %803 = vmatpush.bf16.msra.mxu0 0
    %804 = vmatpush.bf16.msra.mxu0 0
    %805 = vmatpush.bf16.msra.mxu0 0
    %806 = vmatpush.bf16.msra.mxu0 0
    %807 = vmatpush.bf16.msra.mxu0 0
    %808 = vmatpush.bf16.msra.mxu0 0
    %809 = vmatpush.bf16.msra.mxu0 %v797
    %810 = vmatpush.bf16.msra.mxu0 %v796
    %811 = vmatmul.bf16.gmra.mxu0 %v801
    %v812 = vpop.f32.mrf.mxu0
    %v813 = vadd.f32 %v786, %v812
    %v814 = vpop.f32.mrf.mxu0
    %v815 = vadd.f32 %v786, %v814
    %816 = vdwg.mxu0
    %v817 = vmul.f32 %v813, 1.702
    %v818 = vmul.f32 %v815, 1.702
    %v819 = vxor.u32 %v817, 2147483648
    %v820 = vxor.u32 %v818, 2147483648
    %v821 = vmul.f32 %v819, 1.442695
    %v822 = vpow.pop %v821
    %v823 = vmul.f32 %v820, 1.442695
    %v824 = vpow.pop %v823
    %v825 = vadd.f32 %v822, 1.0
    %v826 = vadd.f32 %v824, 1.0
    %v827 = vrcp.pop %v825
    %v828 = vmul.f32 %v825, %v827
    %v829 = vsub.f32 1.0, %v828
    %v830 = vmul.f32 %v827, %v829
    %v831 = vadd.f32 %v827, %v830
    %vm832 = vweird.f32 %v825
    %vm833 = vweird.f32 %v827
    %vm834 = vmor %vm832, %vm833
    %v835 = vsel %vm834, %v827, %v831
    %v836 = vand.u32 2147483647, %v825
    %vm837 = vcmp.eq.f32.partialorder %v836, 8.507059e+37
    %v838 = vand.u32 %v825, 2147483648
    %v839 = vor.u32 1.1754944e-38, %v838
    %v840 = vsel %vm837, %v839, %v835
    %v841 = vmul.f32 1.0, %v840
    %v842 = vrcp.pop %v826
    %v843 = vmul.f32 %v826, %v842
    %v844 = vsub.f32 1.0, %v843
    %v845 = vmul.f32 %v842, %v844
    %v846 = vadd.f32 %v842, %v845
    %vm847 = vweird.f32 %v826
    %vm848 = vweird.f32 %v842
    %vm849 = vmor %vm847, %vm848
    %v850 = vsel %vm849, %v842, %v846
    %v851 = vand.u32 2147483647, %v826
    %vm852 = vcmp.eq.f32.partialorder %v851, 8.507059e+37
    %v853 = vand.u32 %v826, 2147483648
    %v854 = vor.u32 1.1754944e-38, %v853
    %v855 = vsel %vm852, %v854, %v850
    %v856 = vmul.f32 1.0, %v855
    %v857 = vmul.f32 %v813, %v841
    %v858 = vmul.f32 %v815, %v856
    %v859 = vpack.c.bf16 %v858, %v857
    %v860 = vld [vmem:[%s11] sm:$0xf]
    %v861 = vld [vmem:[%s11 + $0x4] sm:$0xf]
    %v862 = vld [vmem:[%s11 + $0x8] sm:$0xf]
    %v863 = vld [vmem:[%s11 + $0xc] sm:$0xf]
    %v864 = vld [vmem:[%s11 + $0x10] sm:$0xf]
    %v865 = vld [vmem:[%s11 + $0x14] sm:$0xf]
    %v866 = vld [vmem:[%s11 + $0x18] sm:$0xf]
    %v867 = vld [vmem:[%s11 + $0x1c] sm:$0xf]
    %v868 = vld [vmem:[%s11 + $0x20] sm:$0xf]
    %v869 = vld [vmem:[%s11 + $0x24] sm:$0xf]
    %v870 = vld [vmem:[%s11 + $0x28] sm:$0xf]
    %v871 = vld [vmem:[%s11 + $0x2c] sm:$0xf]
    %v872 = vld [vmem:[%s11 + $0x30] sm:$0xf]
    %v873 = vld [vmem:[%s11 + $0x34] sm:$0xf]
    %v874 = vld [vmem:[%s11 + $0x38] sm:$0xf]
    %v875 = vld [vmem:[%s11 + $0x3c] sm:$0xf]
    %v876 = vld [vmem:[%s12] sm:$0x1]
    %v878 = vperm.slane %v876, 0
    %v896 = vunpack.c.l.b16 %v860
    %v897 = vunpack.c.l.b16 %v861
    %v898 = vunpack.c.l.b16 %v862
    %v899 = vunpack.c.l.b16 %v863
    %v900 = vunpack.c.l.b16 %v864
    %v901 = vunpack.c.l.b16 %v865
    %v902 = vunpack.c.l.b16 %v866
    %v903 = vunpack.c.l.b16 %v867
    %v904 = vunpack.c.l.b16 %v868
    %v905 = vunpack.c.l.b16 %v869
    %v906 = vunpack.c.l.b16 %v870
    %v907 = vunpack.c.l.b16 %v871
    %v908 = vunpack.c.l.b16 %v872
    %v909 = vunpack.c.l.b16 %v873
    %v910 = vunpack.c.l.b16 %v874
    %v911 = vunpack.c.l.b16 %v875
    %v912 = vpack.c.b16 %v897, %v896
    %v913 = vpack.c.b16 %v899, %v898
    %v914 = vpack.c.b16 %v901, %v900
    %v915 = vpack.c.b16 %v903, %v902
    %v916 = vpack.c.b16 %v905, %v904
    %v917 = vpack.c.b16 %v907, %v906
    %v918 = vpack.c.b16 %v909, %v908
    %v919 = vpack.c.b16 %v911, %v910
    %928 = vmatpush.bf16.msra.mxu0 %v919
    %929 = vmatpush.bf16.msra.mxu0 %v918
    %930 = vmatpush.bf16.msra.mxu0 %v917
    %931 = vmatpush.bf16.msra.mxu0 %v916
    %932 = vmatpush.bf16.msra.mxu0 %v915
    %933 = vmatpush.bf16.msra.mxu0 %v914
    %934 = vmatpush.bf16.msra.mxu0 %v913
    %935 = vmatpush.bf16.msra.mxu0 %v912
    %936 = vmatmul.bf16.gmra.mxu0 %v859
    %v937 = vpop.f32.mrf.mxu0
    %v938 = vadd.f32 %v878, %v937
    %v939 = vpop.f32.mrf.mxu0
    %v940 = vadd.f32 %v878, %v939
    %941 = vdwg.mxu0
    %v942 = vadd.f32 %v721, %v938
    %v943 = vadd.f32 %v722, %v940
    %944 = vst.msk [vmem:[#allocation3] sm:$0xff] %vm50, %v942
    %945 = vst.msk [vmem:[#allocation3 + $0x8] sm:$0xff] %vm50, %v943
    // Predicated region
    $region54: #{tpu_custom_call.1} parent=1 // pred_check
      _
    $region55: #{tpu_custom_call.1} parent=1 // pred_check_branch
      %947 = sbr.rel (0) target = $region57
    $region56: #{tpu_custom_call.1} parent=1 // pred_region
      %949 = vsyncadd [#allocation4], 0
      %s950 = sshll.u32 [#allocation3], 4
      %s951 = int_to_ptr.vmem [resolvable:$true] %s950
      %s952 = sshll.u32 %s13, 4
      %s953 = int_to_ptr.hbm [resolvable:$true] %s952
      %958 = dma.vmem_to_hbm [thread:$0]  %s951, 256, %s953, [#allocation4], 128, 128, 8
    $region57: #{tpu_custom_call.1} parent=1 // pred_fallthru
      _
    // Predicated region
    $region58: #{tpu_custom_call.1} parent=1 // pred_check
      _
    $region59: #{tpu_custom_call.1} parent=1 // pred_check_branch
      %960 = sbr.rel (0) target = $region61
    $region60: #{tpu_custom_call.1} parent=1 // pred_region
      %962 = dma.done [#allocation4], 256
    $region61: #{tpu_custom_call.1} parent=1 // pred_fallthru
      _
    %963 = vsyncpa [#allocation4], 1

</llo_original>
